<compile_context>
chip_gen: v6e
topology: v6e:2x2x1
jax: 0.10.0
libtpu: 0.0.40
codegen_flags: <defaults>
</compile_context>

<pallas_src>
import jax
import jax.numpy as jnp
import numpy as np
from jax.experimental import pallas as pl
from jax.experimental.pallas import tpu as pltpu

HIDDEN = 256   # fc hidden width (fixed by the module: fc_dim = 256)
LANE = 128     # lane-dense fused output width (>= 2 + K*K*2 for K <= 7)


# -----------------------------------------------------------------------------
# Pallas kernel: one batch tile, full fused MLP (3 MXU matmuls + relus + biases).
# -----------------------------------------------------------------------------
def _deformation_kernel(
    x_ref,       # (bm, D_in)        f32    flattened ROI features tile
    w_sh_ref,    # (D_in, 256)       bf16   fc_shared
    b_sh_ref,    # (1, 256)          f32
    w_b1_ref,    # (256, 512)        bf16   [fc_regr1 | fc_cls1]
    b_b1_ref,    # (1, 512)          f32
    w_out_ref,   # (512, 128)        bf16   block-diag [fc_regr2 ; fc_cls2], lane padded
    b_out_ref,   # (1, 128)          f32
    out_ref,     # (bm, 128)         f32    [regr(2) | cls(K*K*2) | pad]
):
    # f32 x tile -> bf16 on the VPU (hidden under the MXU), then fc_shared.
    x = x_ref[...].astype(jnp.bfloat16)
    s = jnp.dot(x, w_sh_ref[...], preferred_element_type=jnp.float32)
    # relu fused with the bf16 downcast: one pass over the (bm, 256) tile.
    shared = jnp.maximum(s + b_sh_ref[...], 0.0).astype(jnp.bfloat16)

    # fused fc_regr1 / fc_cls1 + relu: one (bm,256)x(256,512) matmul.
    y = jnp.dot(shared, w_b1_ref[...], preferred_element_type=jnp.float32)
    y = jnp.maximum(y + b_b1_ref[...], 0.0).astype(jnp.bfloat16)

    # fused fc_regr2 / fc_cls2: block-diagonal weight -> lane-dense 128-wide result.
    out = jnp.dot(y, w_out_ref[...], preferred_element_type=jnp.float32)
    out_ref[...] = (out + b_out_ref[...]).astype(out_ref.dtype)


# -----------------------------------------------------------------------------
# One-time parameter fusion / casting (done at param-build time, not per call).
# -----------------------------------------------------------------------------
def fuse_params(params):
    (w_sh, b_sh, w_r1, b_r1, w_r2, b_r2, w_c1, b_c1, w_c2, b_c2) = params
    regr_out = w_r2.shape[1]
    cls_out = w_c2.shape[1]
    assert regr_out + cls_out <= LANE, "fused output must fit in one 128-lane tile"

    # branch-1 fusion
    w_b1 = jnp.concatenate([w_r1, w_c1], axis=1)          # (256, 512)
    b_b1 = jnp.concatenate([b_r1, b_c1], axis=1)          # (1, 512)

    # block-diagonal output fusion, zero padded to 128 lanes
    w_out = jnp.zeros((2 * HIDDEN, LANE), jnp.float32)
    w_out = w_out.at[:HIDDEN, :regr_out].set(w_r2)
    w_out = w_out.at[HIDDEN:, regr_out:regr_out + cls_out].set(w_c2)
    b_out = jnp.zeros((1, LANE), jnp.float32)
    b_out = b_out.at[:, :regr_out].set(b_r2)
    b_out = b_out.at[:, regr_out:regr_out + cls_out].set(b_c2)

    return dict(
        w_sh=w_sh.astype(jnp.bfloat16),
        b_sh=b_sh.astype(jnp.float32),
        w_b1=w_b1.astype(jnp.bfloat16),
        b_b1=b_b1.astype(jnp.float32),
        w_out=w_out.astype(jnp.bfloat16),
        b_out=b_out.astype(jnp.float32),
        regr_out=regr_out,
        cls_out=cls_out,
    )


# -----------------------------------------------------------------------------
# Tiling / VMEM sizing helpers.
# -----------------------------------------------------------------------------
def _round_up(v, m):
    return (v + m - 1) // m * m


def _choose_block_m(n, d_in, *, max_tile=512, x_budget_bytes=16 << 20):
    """Batch tile size.

    Small ROI batches (< 256): one exact tile (block_m = N) -> no wasted rows.
    Large batches: tiles up to `max_tile` rows, capped so the double-buffered
    f32 x tile stays within `x_budget_bytes`, split into >= 2 grid steps so
    both v7x TensorCores get work (fewer, larger steps on v5e/v6e).
    """
    per_row = 2 * 4 * max(d_in, 1)                     # double-buffered f32 row
    cap = max(16, min(max_tile, (x_budget_bytes // per_row) // 16 * 16))
    if n < 256 and n <= cap:
        return max(n, 1)                               # exact tile, no padded rows
    steps = max(2, pl.cdiv(n, cap))                    # >= 2 steps for megacore
    return min(cap, _round_up(pl.cdiv(n, steps), 16))


def _vmem_limit_bytes(block_m, d_in):
    """Scoped-VMEM request sized from the actual buffers, with headroom."""
    db = 2  # pallas_call double-buffers every operand by default
    weights = (d_in * HIDDEN + HIDDEN * 2 * HIDDEN + 2 * HIDDEN * LANE) * 2 * db
    biases = (8 * HIDDEN + 8 * 2 * HIDDEN + 8 * LANE) * 4 * db   # sublane-padded f32
    x_tiles = block_m * d_in * 4 * db
    out_tiles = block_m * LANE * 4 * db
    temps = block_m * (d_in * 2 + HIDDEN * 6 + 2 * HIDDEN * 6 + LANE * 4)
    est = weights + biases + x_tiles + out_tiles + temps
    # floor 16 MiB (plenty of margin at small shapes), cap 48 MiB (< v7x 64 MiB).
    return int(min(max(int(est * 1.5) + (4 << 20), 16 << 20), 48 << 20))


# -----------------------------------------------------------------------------
# Forward wrapper: adaptive 1-D batch grid, lane-dense fused output sliced back
# into (regr, cls).  No wrapper-side cast/pad of x (no extra HBM passes).
# -----------------------------------------------------------------------------
def deformation_forward(x_nchw, fused, *, block_m=None):
    n = x_nchw.shape[0]
    d_in = int(np.prod(x_nchw.shape[1:]))
    regr_out = fused["regr_out"]
    cls_out = fused["cls_out"]

    # flatten (row-major, matches torch.flatten(x, 1)); layout-preserving.
    x_flat = x_nchw.reshape(n, d_in)

    bm = _choose_block_m(n, d_in) if block_m is None else block_m
    grid = (pl.cdiv(n, bm),)
    rows = grid[0] * bm   # rows pushed through the MXU (incl. ragged-tile pad)

    flops = 2 * rows * (d_in * HIDDEN + HIDDEN * 2 * HIDDEN + 2 * HIDDEN * LANE)
    bytes_accessed = (
        rows * d_in * 4                        # x (f32, cast to bf16 in-kernel)
        + d_in * HIDDEN * 2                    # w_sh (bf16)
        + HIDDEN * 2 * HIDDEN * 2              # w_b1 (bf16)
        + 2 * HIDDEN * LANE * 2                # w_out (bf16)
        + (HIDDEN + 2 * HIDDEN + LANE) * 4     # biases (f32)
        + rows * LANE * 4                      # fused output (f32)
    )

    out = pl.pallas_call(
        _deformation_kernel,
        out_shape=jax.ShapeDtypeStruct((n, LANE), jnp.float32),
        grid=grid,
        in_specs=[
            pl.BlockSpec((bm, d_in), lambda i: (i, 0)),        # x tile streams
            pl.BlockSpec((d_in, HIDDEN), lambda i: (0, 0)),    # weights resident
            pl.BlockSpec((1, HIDDEN), lambda i: (0, 0)),
            pl.BlockSpec((HIDDEN, 2 * HIDDEN), lambda i: (0, 0)),
            pl.BlockSpec((1, 2 * HIDDEN), lambda i: (0, 0)),
            pl.BlockSpec((2 * HIDDEN, LANE), lambda i: (0, 0)),
            pl.BlockSpec((1, LANE), lambda i: (0, 0)),
        ],
        out_specs=pl.BlockSpec((bm, LANE), lambda i: (i, 0)),
        compiler_params=pltpu.CompilerParams(
            dimension_semantics=("parallel",),                 # v7x: 2 TCs
            vmem_limit_bytes=_vmem_limit_bytes(bm, d_in)),
        cost_estimate=pl.CostEstimate(
            flops=flops, transcendentals=0, bytes_accessed=bytes_accessed),
    )(x_flat, fused["w_sh"], fused["b_sh"], fused["w_b1"], fused["b_b1"],
      fused["w_out"], fused["b_out"])

    regr = out[:, :regr_out]
    cls = out[:, regr_out:regr_out + cls_out]
    return regr, cls


# -----------------------------------------------------------------------------
# Deterministic parameter construction (c2_xavier_fill-like fan-in uniform).
# Weights are (in_features, out_features) so y = x @ W + b.
# -----------------------------------------------------------------------------
def make_params(key, in_dim, k=7):
    cls_out = k * k * 2  # 98
    regr_out = 2

    def linear(key, fan_in, fan_out):
        kw, kb = jax.random.split(key)
        bound = float(np.sqrt(1.0 / fan_in))
        w = jax.random.uniform(kw, (fan_in, fan_out), jnp.float32, -bound, bound)
        b = jax.random.uniform(kb, (1, fan_out), jnp.float32, -bound, bound)
        return w, b

    keys = jax.random.split(key, 5)
    w_sh, b_sh = linear(keys[0], in_dim, HIDDEN)      # fc_shared
    w_r1, b_r1 = linear(keys[1], HIDDEN, HIDDEN)      # fc_regr1
    w_r2, b_r2 = linear(keys[2], HIDDEN, regr_out)    # fc_regr2
    w_c1, b_c1 = linear(keys[3], HIDDEN, HIDDEN)      # fc_cls1
    w_c2, b_c2 = linear(keys[4], HIDDEN, cls_out)     # fc_cls2
    return (w_sh, b_sh, w_r1, b_r1, w_r2, b_r2, w_c1, b_c1, w_c2, b_c2)


def reference_forward(x_nchw, params):
    """Reference with the same bf16-in / f32-accumulate numerics as the kernel
    (the module's math is unchanged; only the matmul input precision differs)."""
    (w_sh, b_sh, w_r1, b_r1, w_r2, b_r2, w_c1, b_c1, w_c2, b_c2) = params
    bf = jnp.bfloat16

    def mm(a, w):
        return jnp.dot(a.astype(bf), w.astype(bf), preferred_element_type=jnp.float32)

    x = x_nchw.reshape(x_nchw.shape[0], -1)
    shared = jax.nn.relu(mm(x, w_sh) + b_sh)
    r = jax.nn.relu(mm(shared, w_r1) + b_r1)
    r = mm(r, w_r2) + b_r2
    c = jax.nn.relu(mm(shared, w_c1) + b_c1)
    c = mm(c, w_c2) + b_c2
    return r, c


if __name__ == "__main__":
    # Small shapes consistent with the module: ROI features (N, C, H, W).
    N, C, H, W = 2, 4, 16, 16    # flattened input dim = 1024
    K = 7                        # cls output = K*K*2 = 98

    key = jax.random.PRNGKey(0)
    kx, kp = jax.random.split(key)
    x = jax.random.normal(kx, (N, C, H, W), jnp.float32)
    params = make_params(kp, C * H * W, k=K)
    fused = fuse_params(params)

    regr, cls = deformation_forward(x, fused)
    jax.block_until_ready((regr, cls))

    regr_ref, cls_ref = reference_forward(x, params)
    assert regr.shape == (N, 2) and cls.shape == (N, K * K * 2)
    np.testing.assert_allclose(np.asarray(regr), np.asarray(regr_ref),
                               rtol=1e-2, atol=1e-2)
    np.testing.assert_allclose(np.asarray(cls), np.asarray(cls_ref),
                               rtol=1e-2, atol=1e-2)

    print("KERNEL_OK")
</pallas_src>

<mosaic_0001>
module attributes {stable_mosaic.version = 11 : i64} {
  func.func @_deformation_kernel(%arg0: i32, %arg1: memref<2x1024xf32, #tpu.memory_space<vmem>>, %arg2: memref<1024x256xbf16, #tpu.memory_space<vmem>>, %arg3: memref<1x256xf32, #tpu.memory_space<vmem>>, %arg4: memref<256x512xbf16, #tpu.memory_space<vmem>>, %arg5: memref<1x512xf32, #tpu.memory_space<vmem>>, %arg6: memref<512x128xbf16, #tpu.memory_space<vmem>>, %arg7: memref<1x128xf32, #tpu.memory_space<vmem>>, %arg8: memref<2x128xf32, #tpu.memory_space<vmem>>) attributes {dimension_semantics = [#tpu.dimension_semantics<parallel>], iteration_bounds = array<i64: 1>, scalar_prefetch = 0 : i64, scratch_operands = 0 : i64, tpu.core_type = #tpu.core_type<tc>, window_params = [{transform_indices = @transform_0, window_bounds = array<i64: 2, 1024>}, {pipeline_mode = #tpu.pipeline_mode<synchronous>, transform_indices = @transform_1, window_bounds = array<i64: 1024, 256>}, {pipeline_mode = #tpu.pipeline_mode<synchronous>, transform_indices = @transform_2, window_bounds = array<i64: 1, 256>}, {pipeline_mode = #tpu.pipeline_mode<synchronous>, transform_indices = @transform_3, window_bounds = array<i64: 256, 512>}, {pipeline_mode = #tpu.pipeline_mode<synchronous>, transform_indices = @transform_4, window_bounds = array<i64: 1, 512>}, {pipeline_mode = #tpu.pipeline_mode<synchronous>, transform_indices = @transform_5, window_bounds = array<i64: 512, 128>}, {pipeline_mode = #tpu.pipeline_mode<synchronous>, transform_indices = @transform_6, window_bounds = array<i64: 1, 128>}, {transform_indices = @transform_7, window_bounds = array<i64: 2, 128>}]} {
    %c0 = arith.constant 0 : index
    %c0_0 = arith.constant 0 : index
    %0 = vector.load %arg1[%c0, %c0_0] : memref<2x1024xf32, #tpu.memory_space<vmem>>, vector<2x1024xf32>
    %1 = arith.truncf %0 : vector<2x1024xf32> to vector<2x1024xbf16>
    %c0_1 = arith.constant 0 : index
    %c0_2 = arith.constant 0 : index
    %2 = vector.load %arg2[%c0_1, %c0_2] : memref<1024x256xbf16, #tpu.memory_space<vmem>>, vector<1024x256xbf16>
    %cst = arith.constant dense<0.000000e+00> : vector<2x256xf32>
    %3 = tpu.matmul %1, %2, %cst {dimension_numbers = #tpu.dot_dimension_numbers<[1], [0], [0], [1], [0, 0, 1, 1], [], []>} : vector<2x1024xbf16>, vector<1024x256xbf16>, vector<2x256xf32> -> vector<2x256xf32>
    %c0_3 = arith.constant 0 : index
    %c0_4 = arith.constant 0 : index
    %4 = vector.load %arg3[%c0_3, %c0_4] : memref<1x256xf32, #tpu.memory_space<vmem>>, vector<1x256xf32>
    %5 = vector.broadcast %4 : vector<1x256xf32> to vector<2x256xf32>
    %6 = arith.addf %3, %5 : vector<2x256xf32>
    %cst_5 = arith.constant 0.000000e+00 : f32
    %7 = vector.broadcast %cst_5 : f32 to vector<2x256xf32>
    %8 = arith.maximumf %6, %7 : vector<2x256xf32>
    %9 = arith.truncf %8 : vector<2x256xf32> to vector<2x256xbf16>
    %c0_6 = arith.constant 0 : index
    %c0_7 = arith.constant 0 : index
    %10 = vector.load %arg4[%c0_6, %c0_7] : memref<256x512xbf16, #tpu.memory_space<vmem>>, vector<256x512xbf16>
    %cst_8 = arith.constant dense<0.000000e+00> : vector<2x512xf32>
    %11 = tpu.matmul %9, %10, %cst_8 {dimension_numbers = #tpu.dot_dimension_numbers<[1], [0], [0], [1], [0, 0, 1, 1], [], []>} : vector<2x256xbf16>, vector<256x512xbf16>, vector<2x512xf32> -> vector<2x512xf32>
    %c0_9 = arith.constant 0 : index
    %c0_10 = arith.constant 0 : index
    %12 = vector.load %arg5[%c0_9, %c0_10] : memref<1x512xf32, #tpu.memory_space<vmem>>, vector<1x512xf32>
    %13 = vector.broadcast %12 : vector<1x512xf32> to vector<2x512xf32>
    %14 = arith.addf %11, %13 : vector<2x512xf32>
    %cst_11 = arith.constant 0.000000e+00 : f32
    %15 = vector.broadcast %cst_11 : f32 to vector<2x512xf32>
    %16 = arith.maximumf %14, %15 : vector<2x512xf32>
    %17 = arith.truncf %16 : vector<2x512xf32> to vector<2x512xbf16>
    %c0_12 = arith.constant 0 : index
    %c0_13 = arith.constant 0 : index
    %18 = vector.load %arg6[%c0_12, %c0_13] : memref<512x128xbf16, #tpu.memory_space<vmem>>, vector<512x128xbf16>
    %cst_14 = arith.constant dense<0.000000e+00> : vector<2x128xf32>
    %19 = tpu.matmul %17, %18, %cst_14 {dimension_numbers = #tpu.dot_dimension_numbers<[1], [0], [0], [1], [0, 0, 1, 1], [], []>} : vector<2x512xbf16>, vector<512x128xbf16>, vector<2x128xf32> -> vector<2x128xf32>
    %c0_15 = arith.constant 0 : index
    %c0_16 = arith.constant 0 : index
    %20 = vector.load %arg7[%c0_15, %c0_16] : memref<1x128xf32, #tpu.memory_space<vmem>>, vector<1x128xf32>
    %21 = vector.broadcast %20 : vector<1x128xf32> to vector<2x128xf32>
    %22 = arith.addf %19, %21 : vector<2x128xf32>
    %c0_17 = arith.constant 0 : index
    %c0_18 = arith.constant 0 : index
    %23 = vector.load %arg8[%c0_17, %c0_18] : memref<2x128xf32, #tpu.memory_space<vmem>>, vector<2x128xf32>
    tpu.vector_store %arg8[%c0_17, %c0_18], %22 {strides = array<i32>} : memref<2x128xf32, #tpu.memory_space<vmem>>, vector<2x128xf32>,
    return
  }
  func.func @transform_0(%arg0: i32) -> (i32, i32) {
    %c0_i32 = arith.constant 0 : i32
    %c0_i32_0 = arith.constant 0 : i32
    return %arg0, %c0_i32 : i32, i32
  }
  func.func @transform_1(%arg0: i32) -> (i32, i32) {
    %c0_i32 = arith.constant 0 : i32
    %c0_i32_0 = arith.constant 0 : i32
    %c0_i32_1 = arith.constant 0 : i32
    return %c0_i32, %c0_i32_0 : i32, i32
  }
  func.func @transform_2(%arg0: i32) -> (i32, i32) {
    %c0_i32 = arith.constant 0 : i32
    %c0_i32_0 = arith.constant 0 : i32
    %c0_i32_1 = arith.constant 0 : i32
    return %c0_i32, %c0_i32_0 : i32, i32
  }
  func.func @transform_3(%arg0: i32) -> (i32, i32) {
    %c0_i32 = arith.constant 0 : i32
    %c0_i32_0 = arith.constant 0 : i32
    %c0_i32_1 = arith.constant 0 : i32
    return %c0_i32, %c0_i32_0 : i32, i32
  }
  func.func @transform_4(%arg0: i32) -> (i32, i32) {
    %c0_i32 = arith.constant 0 : i32
    %c0_i32_0 = arith.constant 0 : i32
    %c0_i32_1 = arith.constant 0 : i32
    return %c0_i32, %c0_i32_0 : i32, i32
  }
  func.func @transform_5(%arg0: i32) -> (i32, i32) {
    %c0_i32 = arith.constant 0 : i32
    %c0_i32_0 = arith.constant 0 : i32
    %c0_i32_1 = arith.constant 0 : i32
    return %c0_i32, %c0_i32_0 : i32, i32
  }
  func.func @transform_6(%arg0: i32) -> (i32, i32) {
    %c0_i32 = arith.constant 0 : i32
    %c0_i32_0 = arith.constant 0 : i32
    %c0_i32_1 = arith.constant 0 : i32
    return %c0_i32, %c0_i32_0 : i32, i32
  }
  func.func @transform_7(%arg0: i32) -> (i32, i32) {
    %c0_i32 = arith.constant 0 : i32
    %c0_i32_0 = arith.constant 0 : i32
    return %arg0, %c0_i32 : i32, i32
  }
}

</mosaic_0001>

<llo_original>
// kernel: tpu_custom_call.1
$region0: #{tpu_custom_call.1}
  #allocation0 [shape = 'u32[]', space=smem, size = 0x4, offset = 0x4, fixed_abs, tag = 'smem constant byte address 0x4 - core index']
  #allocation1 [shape = 'u32[144,128]{1,0:T(1,128)}', space=vmem, size = 0x12000, scoped, tag = 'internal scratch']
  %s0 = inlined_call_operand.hbm [shape: f32[2,1024], index: 0, kind: input, shape index: {}]
  %s1 = inlined_call_operand.hbm [shape: bf16[1024,256], index: 1, kind: input, shape index: {}]
  %s2 = inlined_call_operand.vmem [shape: f32[1,256], index: 2, kind: input, shape index: {}]
  %s3 = inlined_call_operand.hbm [shape: bf16[256,512], index: 3, kind: input, shape index: {}]
  %s4 = inlined_call_operand.vmem [shape: f32[1,512], index: 4, kind: input, shape index: {}]
  %s5 = inlined_call_operand.hbm [shape: bf16[512,128], index: 5, kind: input, shape index: {}]
  %s6 = inlined_call_operand.vmem [shape: f32[1,128], index: 6, kind: input, shape index: {}]
  %s7 = inlined_call_operand.hbm [shape: f32[2,128], index: 7, kind: output, shape index: {}]
  %s8 = sld [smem:[#allocation0]]
  $region54: #{tpu_custom_call.1} parent=0
    _
  %s10 = ssub.s32 1, %s8
  %s11 = scalar_select 0, %s10, %s8
  $region1: #{tpu_custom_call.1} parent=0
    #allocation2 [shape = 'u8[8192]{0}', space=vmem, size = 0x2000, scoped, tag = 'input window, operand 0, single buffered']
    #allocation3 [shape = 's32[1]{0}', space=sflag, size = 0x4, scoped, tag = 'scoped memory for tpu_custom_call.1']
    #allocation4 [shape = 's32[1]{0}', space=sflag, size = 0x4, scoped, tag = 'scoped memory for tpu_custom_call.1']
    #allocation5 [shape = 'u8[524288]{0}', space=vmem, size = 0x80000, scoped, tag = 'input window, operand 1, single buffered']
    #allocation6 [shape = 's32[1]{0}', space=sflag, size = 0x4, scoped, tag = 'scoped memory for tpu_custom_call.1']
    #allocation7 [shape = 'u8[262144]{0}', space=vmem, size = 0x40000, scoped, tag = 'input window, operand 3, single buffered']
    #allocation8 [shape = 'u8[131072]{0}', space=vmem, size = 0x20000, scoped, tag = 'input window, operand 5, single buffered']
    #allocation9 [shape = 's32[1]{0}', space=sflag, size = 0x4, scoped, tag = 'scoped memory for tpu_custom_call.1']
    #allocation10 [shape = 'u8[1024]{0}', space=vmem, size = 0x400, scoped, tag = 'output window, operand 0, single buffered']
    %12 = vsyncpa [#allocation3], 0
    %13 = vsyncpa [#allocation6], 0
    %14 = vsyncpa [#allocation9], 0
    %15 = vsyncpa [#allocation4], 0
    // Predicated region
    $region2: #{tpu_custom_call.1} parent=1 // pred_check
      _
    $region3: #{tpu_custom_call.1} parent=1 // pred_check_branch
      %17 = sbr.rel (0) target = $region5
    $region4: #{tpu_custom_call.1} parent=1 // pred_region
      %s19 = ssub.s32 256, 256
      %20 = vsyncadd [#allocation3], %s19
      %s22 = sshll.u32 [#allocation2], 4
      %s23 = int_to_ptr.vmem [resolvable:$true] %s22
      %25 = dma.hbm_to_vmem [thread:$0]  %s0, 256, %s23, [#allocation3]
    $region5: #{tpu_custom_call.1} parent=1 // pred_fallthru
      _
    // Predicated region
    $region6: #{tpu_custom_call.1} parent=1 // pred_check
      _
    $region7: #{tpu_custom_call.1} parent=1 // pred_check_branch
      %27 = sbr.rel (0) target = $region9
    $region8: #{tpu_custom_call.1} parent=1 // pred_region
      %s29 = ssub.s32 16384, 16384
      %30 = vsyncadd [#allocation6], %s29
      %s31 = sshll.u32 [#allocation5], 4
      %s32 = int_to_ptr.vmem [resolvable:$true] %s31
      %37 = dma.hbm_to_vmem [thread:$0]  %s1, 16384, %s32, [#allocation6], 128, 128, 8
    $region9: #{tpu_custom_call.1} parent=1 // pred_fallthru
      _
    // Predicated region
    $region10: #{tpu_custom_call.1} parent=1 // pred_check
      _
    $region11: #{tpu_custom_call.1} parent=1 // pred_check_branch
      %39 = sbr.rel (0) target = $region13
    $region12: #{tpu_custom_call.1} parent=1 // pred_region
      _
    $region13: #{tpu_custom_call.1} parent=1 // pred_fallthru
      _
    // Predicated region
    $region14: #{tpu_custom_call.1} parent=1 // pred_check
      _
    $region15: #{tpu_custom_call.1} parent=1 // pred_check_branch
      %41 = sbr.rel (0) target = $region17
    $region16: #{tpu_custom_call.1} parent=1 // pred_region
      %s43 = ssub.s32 8192, 8192
      %44 = vsyncadd [#allocation6], %s43
      %s45 = sshll.u32 [#allocation7], 4
      %s46 = int_to_ptr.vmem [resolvable:$true] %s45
      %51 = dma.hbm_to_vmem [thread:$0]  %s3, 8192, %s46, [#allocation6], 256, 256, 16
    $region17: #{tpu_custom_call.1} parent=1 // pred_fallthru
      _
    // Predicated region
    $region18: #{tpu_custom_call.1} parent=1 // pred_check
      _
    $region19: #{tpu_custom_call.1} parent=1 // pred_check_branch
      %53 = sbr.rel (0) target = $region21
    $region20: #{tpu_custom_call.1} parent=1 // pred_region
      _
    $region21: #{tpu_custom_call.1} parent=1 // pred_fallthru
      _
    // Predicated region
    $region22: #{tpu_custom_call.1} parent=1 // pred_check
      _
    $region23: #{tpu_custom_call.1} parent=1 // pred_check_branch
      %55 = sbr.rel (0) target = $region25
    $region24: #{tpu_custom_call.1} parent=1 // pred_region
      %s57 = ssub.s32 4096, 4096
      %58 = vsyncadd [#allocation9], %s57
      %s59 = sshll.u32 [#allocation8], 4
      %s60 = int_to_ptr.vmem [resolvable:$true] %s59
      %65 = dma.hbm_to_vmem [thread:$0]  %s5, 4096, %s60, [#allocation9], 64, 64, 4
    $region25: #{tpu_custom_call.1} parent=1 // pred_fallthru
      _
    // Predicated region
    $region26: #{tpu_custom_call.1} parent=1 // pred_check
      _
    $region27: #{tpu_custom_call.1} parent=1 // pred_check_branch
      %67 = sbr.rel (0) target = $region29
    $region28: #{tpu_custom_call.1} parent=1 // pred_region
      _
    $region29: #{tpu_custom_call.1} parent=1 // pred_fallthru
      _
    // Predicated region
    $region30: #{tpu_custom_call.1} parent=1 // pred_check
      _
    $region31: #{tpu_custom_call.1} parent=1 // pred_check_branch
      %69 = sbr.rel (0) target = $region33
    $region32: #{tpu_custom_call.1} parent=1 // pred_region
      %70 = dma.done [#allocation3], 256
    $region33: #{tpu_custom_call.1} parent=1 // pred_fallthru
      _
    // Predicated region
    $region34: #{tpu_custom_call.1} parent=1 // pred_check
      _
    $region35: #{tpu_custom_call.1} parent=1 // pred_check_branch
      %72 = sbr.rel (0) target = $region37
    $region36: #{tpu_custom_call.1} parent=1 // pred_region
      %73 = dma.done [#allocation6], 16384
    $region37: #{tpu_custom_call.1} parent=1 // pred_fallthru
      _
    // Predicated region
    $region38: #{tpu_custom_call.1} parent=1 // pred_check
      _
    $region39: #{tpu_custom_call.1} parent=1 // pred_check_branch
      %75 = sbr.rel (0) target = $region41
    $region40: #{tpu_custom_call.1} parent=1 // pred_region
      %76 = dma.done [#allocation6], 8192
    $region41: #{tpu_custom_call.1} parent=1 // pred_fallthru
      _
    // Predicated region
    $region42: #{tpu_custom_call.1} parent=1 // pred_check
      _
    $region43: #{tpu_custom_call.1} parent=1 // pred_check_branch
      %78 = sbr.rel (0) target = $region45
    $region44: #{tpu_custom_call.1} parent=1 // pred_region
      %79 = dma.done [#allocation9], 4096
    $region45: #{tpu_custom_call.1} parent=1 // pred_fallthru
      _
    %v81 = vld [vmem:[#allocation2] sm:$0xff]
    %v82 = vld [vmem:[#allocation2 + $0x8] sm:$0xff]
    %v85 = vcombine.high %v81, %v81
    %v87 = vunpack.c.l.s4 1983009808
    %v88 = vunpack.c.0.s8 %v87
    %v89 = vlaneseq
    %v90 = vshrl.u32 %v89, 7
    %v91 = vsub.s32 %v88, %v90
    %v92 = vrot.slane %v81, %v91
    %v94 = vunpack.c.l.s4 1983009808
    %v95 = vunpack.c.0.s8 %v94
    %v96 = vlaneseq
    %v97 = vshrl.u32 %v96, 7
    %v98 = vsub.s32 %v95, %v97
    %v99 = vrot.slane %v85, %v98
    %v100 = vcombine.high %v92, %v92
    %v101 = vcombine.high %v99, %v99
    %v102 = vcombine.high %v82, %v82
    %v104 = vunpack.c.l.s4 1983009808
    %v105 = vunpack.c.0.s8 %v104
    %v106 = vlaneseq
    %v107 = vshrl.u32 %v106, 7
    %v108 = vsub.s32 %v105, %v107
    %v109 = vrot.slane %v82, %v108
    %v111 = vunpack.c.l.s4 1983009808
    %v112 = vunpack.c.0.s8 %v111
    %v113 = vlaneseq
    %v114 = vshrl.u32 %v113, 7
    %v115 = vsub.s32 %v112, %v114
    %v116 = vrot.slane %v102, %v115
    %v117 = vcombine.high %v109, %v109
    %v118 = vcombine.high %v116, %v116
    %v127 = vpack.c.bf16 %v92, %v92
    %v128 = vpack.c.bf16 %v100, %v100
    %v129 = vpack.c.bf16 %v99, %v99
    %v130 = vpack.c.bf16 %v101, %v101
    %v131 = vpack.c.bf16 %v109, %v109
    %v132 = vpack.c.bf16 %v117, %v117
    %v133 = vpack.c.bf16 %v116, %v116
    %v134 = vpack.c.bf16 %v118, %v118
    %v135 = vld [vmem:[#allocation5] sm:$0xff]
    %v136 = vld [vmem:[#allocation5 + $0x8] sm:$0xff]
    %v137 = vld [vmem:[#allocation5 + $0x10] sm:$0xff]
    %v138 = vld [vmem:[#allocation5 + $0x18] sm:$0xff]
    %v139 = vld [vmem:[#allocation5 + $0x20] sm:$0xff]
    %v140 = vld [vmem:[#allocation5 + $0x28] sm:$0xff]
    %v141 = vld [vmem:[#allocation5 + $0x30] sm:$0xff]
    %v142 = vld [vmem:[#allocation5 + $0x38] sm:$0xff]
    %v143 = vld [vmem:[#allocation5 + $0x40] sm:$0xff]
    %v144 = vld [vmem:[#allocation5 + $0x48] sm:$0xff]
    %v145 = vld [vmem:[#allocation5 + $0x50] sm:$0xff]
    %v146 = vld [vmem:[#allocation5 + $0x58] sm:$0xff]
    %v147 = vld [vmem:[#allocation5 + $0x60] sm:$0xff]
    %v148 = vld [vmem:[#allocation5 + $0x68] sm:$0xff]
    %v149 = vld [vmem:[#allocation5 + $0x70] sm:$0xff]
    %v150 = vld [vmem:[#allocation5 + $0x78] sm:$0xff]
    %v151 = vld [vmem:[#allocation5 + $0x80] sm:$0xff]
    %v152 = vld [vmem:[#allocation5 + $0x88] sm:$0xff]
    %v153 = vld [vmem:[#allocation5 + $0x90] sm:$0xff]
    %v154 = vld [vmem:[#allocation5 + $0x98] sm:$0xff]
    %v155 = vld [vmem:[#allocation5 + $0xa0] sm:$0xff]
    %v156 = vld [vmem:[#allocation5 + $0xa8] sm:$0xff]
    %v157 = vld [vmem:[#allocation5 + $0xb0] sm:$0xff]
    %v158 = vld [vmem:[#allocation5 + $0xb8] sm:$0xff]
    %v159 = vld [vmem:[#allocation5 + $0xc0] sm:$0xff]
    %v160 = vld [vmem:[#allocation5 + $0xc8] sm:$0xff]
    %v161 = vld [vmem:[#allocation5 + $0xd0] sm:$0xff]
    %v162 = vld [vmem:[#allocation5 + $0xd8] sm:$0xff]
    %v163 = vld [vmem:[#allocation5 + $0xe0] sm:$0xff]
    %v164 = vld [vmem:[#allocation5 + $0xe8] sm:$0xff]
    %v165 = vld [vmem:[#allocation5 + $0xf0] sm:$0xff]
    %v166 = vld [vmem:[#allocation5 + $0xf8] sm:$0xff]
    %v167 = vld [vmem:[#allocation5 + $0x100] sm:$0xff]
    %v168 = vld [vmem:[#allocation5 + $0x108] sm:$0xff]
    %v169 = vld [vmem:[#allocation5 + $0x110] sm:$0xff]
    %v170 = vld [vmem:[#allocation5 + $0x118] sm:$0xff]
    %v171 = vld [vmem:[#allocation5 + $0x120] sm:$0xff]
    %v172 = vld [vmem:[#allocation5 + $0x128] sm:$0xff]
    %v173 = vld [vmem:[#allocation5 + $0x130] sm:$0xff]
    %v174 = vld [vmem:[#allocation5 + $0x138] sm:$0xff]
    %v175 = vld [vmem:[#allocation5 + $0x140] sm:$0xff]
    %v176 = vld [vmem:[#allocation5 + $0x148] sm:$0xff]
    %v177 = vld [vmem:[#allocation5 + $0x150] sm:$0xff]
    %v178 = vld [vmem:[#allocation5 + $0x158] sm:$0xff]
    %v179 = vld [vmem:[#allocation5 + $0x160] sm:$0xff]
    %v180 = vld [vmem:[#allocation5 + $0x168] sm:$0xff]
    %v181 = vld [vmem:[#allocation5 + $0x170] sm:$0xff]
    %v182 = vld [vmem:[#allocation5 + $0x178] sm:$0xff]
    %v183 = vld [vmem:[#allocation5 + $0x180] sm:$0xff]
    %v184 = vld [vmem:[#allocation5 + $0x188] sm:$0xff]
    %v185 = vld [vmem:[#allocation5 + $0x190] sm:$0xff]
    %v186 = vld [vmem:[#allocation5 + $0x198] sm:$0xff]
    %v187 = vld [vmem:[#allocation5 + $0x1a0] sm:$0xff]
    %v188 = vld [vmem:[#allocation5 + $0x1a8] sm:$0xff]
    %v189 = vld [vmem:[#allocation5 + $0x1b0] sm:$0xff]
    %v190 = vld [vmem:[#allocation5 + $0x1b8] sm:$0xff]
    %v191 = vld [vmem:[#allocation5 + $0x1c0] sm:$0xff]
    %v192 = vld [vmem:[#allocation5 + $0x1c8] sm:$0xff]
    %v193 = vld [vmem:[#allocation5 + $0x1d0] sm:$0xff]
    %v194 = vld [vmem:[#allocation5 + $0x1d8] sm:$0xff]
    %v195 = vld [vmem:[#allocation5 + $0x1e0] sm:$0xff]
    %v196 = vld [vmem:[#allocation5 + $0x1e8] sm:$0xff]
    %v197 = vld [vmem:[#allocation5 + $0x1f0] sm:$0xff]
    %v198 = vld [vmem:[#allocation5 + $0x1f8] sm:$0xff]
    %v199 = vld [vmem:[#allocation5 + $0x200] sm:$0xff]
    %v200 = vld [vmem:[#allocation5 + $0x208] sm:$0xff]
    %v201 = vld [vmem:[#allocation5 + $0x210] sm:$0xff]
    %v202 = vld [vmem:[#allocation5 + $0x218] sm:$0xff]
    %v203 = vld [vmem:[#allocation5 + $0x220] sm:$0xff]
    %v204 = vld [vmem:[#allocation5 + $0x228] sm:$0xff]
    %v205 = vld [vmem:[#allocation5 + $0x230] sm:$0xff]
    %v206 = vld [vmem:[#allocation5 + $0x238] sm:$0xff]
    %v207 = vld [vmem:[#allocation5 + $0x240] sm:$0xff]
    %v208 = vld [vmem:[#allocation5 + $0x248] sm:$0xff]
    %v209 = vld [vmem:[#allocation5 + $0x250] sm:$0xff]
    %v210 = vld [vmem:[#allocation5 + $0x258] sm:$0xff]
    %v211 = vld [vmem:[#allocation5 + $0x260] sm:$0xff]
    %v212 = vld [vmem:[#allocation5 + $0x268] sm:$0xff]
    %v213 = vld [vmem:[#allocation5 + $0x270] sm:$0xff]
    %v214 = vld [vmem:[#allocation5 + $0x278] sm:$0xff]
    %v215 = vld [vmem:[#allocation5 + $0x280] sm:$0xff]
    %v216 = vld [vmem:[#allocation5 + $0x288] sm:$0xff]
    %v217 = vld [vmem:[#allocation5 + $0x290] sm:$0xff]
    %v218 = vld [vmem:[#allocation5 + $0x298] sm:$0xff]
    %v219 = vld [vmem:[#allocation5 + $0x2a0] sm:$0xff]
    %v220 = vld [vmem:[#allocation5 + $0x2a8] sm:$0xff]
    %v221 = vld [vmem:[#allocation5 + $0x2b0] sm:$0xff]
    %v222 = vld [vmem:[#allocation5 + $0x2b8] sm:$0xff]
    %v223 = vld [vmem:[#allocation5 + $0x2c0] sm:$0xff]
    %v224 = vld [vmem:[#allocation5 + $0x2c8] sm:$0xff]
    %v225 = vld [vmem:[#allocation5 + $0x2d0] sm:$0xff]
    %v226 = vld [vmem:[#allocation5 + $0x2d8] sm:$0xff]
    %v227 = vld [vmem:[#allocation5 + $0x2e0] sm:$0xff]
    %v228 = vld [vmem:[#allocation5 + $0x2e8] sm:$0xff]
    %v229 = vld [vmem:[#allocation5 + $0x2f0] sm:$0xff]
    %v230 = vld [vmem:[#allocation5 + $0x2f8] sm:$0xff]
    %v231 = vld [vmem:[#allocation5 + $0x300] sm:$0xff]
    %v232 = vld [vmem:[#allocation5 + $0x308] sm:$0xff]
    %v233 = vld [vmem:[#allocation5 + $0x310] sm:$0xff]
    %v234 = vld [vmem:[#allocation5 + $0x318] sm:$0xff]
    %v235 = vld [vmem:[#allocation5 + $0x320] sm:$0xff]
    %v236 = vld [vmem:[#allocation5 + $0x328] sm:$0xff]
    %v237 = vld [vmem:[#allocation5 + $0x330] sm:$0xff]
    %v238 = vld [vmem:[#allocation5 + $0x338] sm:$0xff]
    %v239 = vld [vmem:[#allocation5 + $0x340] sm:$0xff]
    %v240 = vld [vmem:[#allocation5 + $0x348] sm:$0xff]
    %v241 = vld [vmem:[#allocation5 + $0x350] sm:$0xff]
    %v242 = vld [vmem:[#allocation5 + $0x358] sm:$0xff]
    %v243 = vld [vmem:[#allocation5 + $0x360] sm:$0xff]
    %v244 = vld [vmem:[#allocation5 + $0x368] sm:$0xff]
    %v245 = vld [vmem:[#allocation5 + $0x370] sm:$0xff]
    %v246 = vld [vmem:[#allocation5 + $0x378] sm:$0xff]
    %v247 = vld [vmem:[#allocation5 + $0x380] sm:$0xff]
    %v248 = vld [vmem:[#allocation5 + $0x388] sm:$0xff]
    %v249 = vld [vmem:[#allocation5 + $0x390] sm:$0xff]
    %v250 = vld [vmem:[#allocation5 + $0x398] sm:$0xff]
    %v251 = vld [vmem:[#allocation5 + $0x3a0] sm:$0xff]
    %v252 = vld [vmem:[#allocation5 + $0x3a8] sm:$0xff]
    %v253 = vld [vmem:[#allocation5 + $0x3b0] sm:$0xff]
    %v254 = vld [vmem:[#allocation5 + $0x3b8] sm:$0xff]
    %v255 = vld [vmem:[#allocation5 + $0x3c0] sm:$0xff]
    %v256 = vld [vmem:[#allocation5 + $0x3c8] sm:$0xff]
    %v257 = vld [vmem:[#allocation5 + $0x3d0] sm:$0xff]
    %v258 = vld [vmem:[#allocation5 + $0x3d8] sm:$0xff]
    %v259 = vld [vmem:[#allocation5 + $0x3e0] sm:$0xff]
    %v260 = vld [vmem:[#allocation5 + $0x3e8] sm:$0xff]
    %v261 = vld [vmem:[#allocation5 + $0x3f0] sm:$0xff]
    %v262 = vld [vmem:[#allocation5 + $0x3f8] sm:$0xff]
    %v263 = vld [vmem:[%s2] sm:$0x3]
    %v265 = vlaneseq
    %v266 = vshrl.u32 %v265, 7
    %v267 = vsub.s32 0, %v266
    %v268 = vrot.slane %v263, %v267
    %v269 = vlaneseq
    %v270 = vshrl.u32 %v269, 7
    %v271 = vsub.s32 1, %v270
    %v272 = vrot.slane %v263, %v271
    %v403 = vunpack.c.l.b16 %v135
    %v404 = vunpack.c.h.b16 %v135
    %v405 = vunpack.c.l.b16 %v136
    %v406 = vunpack.c.h.b16 %v136
    %v407 = vunpack.c.l.b16 %v137
    %v408 = vunpack.c.h.b16 %v137
    %v409 = vunpack.c.l.b16 %v138
    %v410 = vunpack.c.h.b16 %v138
    %v411 = vunpack.c.l.b16 %v139
    %v412 = vunpack.c.h.b16 %v139
    %v413 = vunpack.c.l.b16 %v140
    %v414 = vunpack.c.h.b16 %v140
    %v415 = vunpack.c.l.b16 %v141
    %v416 = vunpack.c.h.b16 %v141
    %v417 = vunpack.c.l.b16 %v142
    %v418 = vunpack.c.h.b16 %v142
    %v419 = vunpack.c.l.b16 %v143
    %v420 = vunpack.c.h.b16 %v143
    %v421 = vunpack.c.l.b16 %v144
    %v422 = vunpack.c.h.b16 %v144
    %v423 = vunpack.c.l.b16 %v145
    %v424 = vunpack.c.h.b16 %v145
    %v425 = vunpack.c.l.b16 %v146
    %v426 = vunpack.c.h.b16 %v146
    %v427 = vunpack.c.l.b16 %v147
    %v428 = vunpack.c.h.b16 %v147
    %v429 = vunpack.c.l.b16 %v148
    %v430 = vunpack.c.h.b16 %v148
    %v431 = vunpack.c.l.b16 %v149
    %v432 = vunpack.c.h.b16 %v149
    %v433 = vunpack.c.l.b16 %v150
    %v434 = vunpack.c.h.b16 %v150
    %v435 = vunpack.c.l.b16 %v151
    %v436 = vunpack.c.h.b16 %v151
    %v437 = vunpack.c.l.b16 %v152
    %v438 = vunpack.c.h.b16 %v152
    %v439 = vunpack.c.l.b16 %v153
    %v440 = vunpack.c.h.b16 %v153
    %v441 = vunpack.c.l.b16 %v154
    %v442 = vunpack.c.h.b16 %v154
    %v443 = vunpack.c.l.b16 %v155
    %v444 = vunpack.c.h.b16 %v155
    %v445 = vunpack.c.l.b16 %v156
    %v446 = vunpack.c.h.b16 %v156
    %v447 = vunpack.c.l.b16 %v157
    %v448 = vunpack.c.h.b16 %v157
    %v449 = vunpack.c.l.b16 %v158
    %v450 = vunpack.c.h.b16 %v158
    %v451 = vunpack.c.l.b16 %v159
    %v452 = vunpack.c.h.b16 %v159
    %v453 = vunpack.c.l.b16 %v160
    %v454 = vunpack.c.h.b16 %v160
    %v455 = vunpack.c.l.b16 %v161
    %v456 = vunpack.c.h.b16 %v161
    %v457 = vunpack.c.l.b16 %v162
    %v458 = vunpack.c.h.b16 %v162
    %v459 = vunpack.c.l.b16 %v163
    %v460 = vunpack.c.h.b16 %v163
    %v461 = vunpack.c.l.b16 %v164
    %v462 = vunpack.c.h.b16 %v164
    %v463 = vunpack.c.l.b16 %v165
    %v464 = vunpack.c.h.b16 %v165
    %v465 = vunpack.c.l.b16 %v166
    %v466 = vunpack.c.h.b16 %v166
    %v467 = vunpack.c.l.b16 %v167
    %v468 = vunpack.c.h.b16 %v167
    %v469 = vunpack.c.l.b16 %v168
    %v470 = vunpack.c.h.b16 %v168
    %v471 = vunpack.c.l.b16 %v169
    %v472 = vunpack.c.h.b16 %v169
    %v473 = vunpack.c.l.b16 %v170
    %v474 = vunpack.c.h.b16 %v170
    %v475 = vunpack.c.l.b16 %v171
    %v476 = vunpack.c.h.b16 %v171
    %v477 = vunpack.c.l.b16 %v172
    %v478 = vunpack.c.h.b16 %v172
    %v479 = vunpack.c.l.b16 %v173
    %v480 = vunpack.c.h.b16 %v173
    %v481 = vunpack.c.l.b16 %v174
    %v482 = vunpack.c.h.b16 %v174
    %v483 = vunpack.c.l.b16 %v175
    %v484 = vunpack.c.h.b16 %v175
    %v485 = vunpack.c.l.b16 %v176
    %v486 = vunpack.c.h.b16 %v176
    %v487 = vunpack.c.l.b16 %v177
    %v488 = vunpack.c.h.b16 %v177
    %v489 = vunpack.c.l.b16 %v178
    %v490 = vunpack.c.h.b16 %v178
    %v491 = vunpack.c.l.b16 %v179
    %v492 = vunpack.c.h.b16 %v179
    %v493 = vunpack.c.l.b16 %v180
    %v494 = vunpack.c.h.b16 %v180
    %v495 = vunpack.c.l.b16 %v181
    %v496 = vunpack.c.h.b16 %v181
    %v497 = vunpack.c.l.b16 %v182
    %v498 = vunpack.c.h.b16 %v182
    %v499 = vunpack.c.l.b16 %v183
    %v500 = vunpack.c.h.b16 %v183
    %v501 = vunpack.c.l.b16 %v184
    %v502 = vunpack.c.h.b16 %v184
    %v503 = vunpack.c.l.b16 %v185
    %v504 = vunpack.c.h.b16 %v185
    %v505 = vunpack.c.l.b16 %v186
    %v506 = vunpack.c.h.b16 %v186
    %v507 = vunpack.c.l.b16 %v187
    %v508 = vunpack.c.h.b16 %v187
    %v509 = vunpack.c.l.b16 %v188
    %v510 = vunpack.c.h.b16 %v188
    %v511 = vunpack.c.l.b16 %v189
    %v512 = vunpack.c.h.b16 %v189
    %v513 = vunpack.c.l.b16 %v190
    %v514 = vunpack.c.h.b16 %v190
    %v515 = vunpack.c.l.b16 %v191
    %v516 = vunpack.c.h.b16 %v191
    %v517 = vunpack.c.l.b16 %v192
    %v518 = vunpack.c.h.b16 %v192
    %v519 = vunpack.c.l.b16 %v193
    %v520 = vunpack.c.h.b16 %v193
    %v521 = vunpack.c.l.b16 %v194
    %v522 = vunpack.c.h.b16 %v194
    %v523 = vunpack.c.l.b16 %v195
    %v524 = vunpack.c.h.b16 %v195
    %v525 = vunpack.c.l.b16 %v196
    %v526 = vunpack.c.h.b16 %v196
    %v527 = vunpack.c.l.b16 %v197
    %v528 = vunpack.c.h.b16 %v197
    %v529 = vunpack.c.l.b16 %v198
    %v530 = vunpack.c.h.b16 %v198
    %v531 = vunpack.c.l.b16 %v199
    %v532 = vunpack.c.h.b16 %v199
    %v533 = vunpack.c.l.b16 %v200
    %v534 = vunpack.c.h.b16 %v200
    %v535 = vunpack.c.l.b16 %v201
    %v536 = vunpack.c.h.b16 %v201
    %v537 = vunpack.c.l.b16 %v202
    %v538 = vunpack.c.h.b16 %v202
    %v539 = vunpack.c.l.b16 %v203
    %v540 = vunpack.c.h.b16 %v203
    %v541 = vunpack.c.l.b16 %v204
    %v542 = vunpack.c.h.b16 %v204
    %v543 = vunpack.c.l.b16 %v205
    %v544 = vunpack.c.h.b16 %v205
    %v545 = vunpack.c.l.b16 %v206
    %v546 = vunpack.c.h.b16 %v206
    %v547 = vunpack.c.l.b16 %v207
    %v548 = vunpack.c.h.b16 %v207
    %v549 = vunpack.c.l.b16 %v208
    %v550 = vunpack.c.h.b16 %v208
    %v551 = vunpack.c.l.b16 %v209
    %v552 = vunpack.c.h.b16 %v209
    %v553 = vunpack.c.l.b16 %v210
    %v554 = vunpack.c.h.b16 %v210
    %v555 = vunpack.c.l.b16 %v211
    %v556 = vunpack.c.h.b16 %v211
    %v557 = vunpack.c.l.b16 %v212
    %v558 = vunpack.c.h.b16 %v212
    %v559 = vunpack.c.l.b16 %v213
    %v560 = vunpack.c.h.b16 %v213
    %v561 = vunpack.c.l.b16 %v214
    %v562 = vunpack.c.h.b16 %v214
    %v563 = vunpack.c.l.b16 %v215
    %v564 = vunpack.c.h.b16 %v215
    %v565 = vunpack.c.l.b16 %v216
    %v566 = vunpack.c.h.b16 %v216
    %v567 = vunpack.c.l.b16 %v217
    %v568 = vunpack.c.h.b16 %v217
    %v569 = vunpack.c.l.b16 %v218
    %v570 = vunpack.c.h.b16 %v218
    %v571 = vunpack.c.l.b16 %v219
    %v572 = vunpack.c.h.b16 %v219
    %v573 = vunpack.c.l.b16 %v220
    %v574 = vunpack.c.h.b16 %v220
    %v575 = vunpack.c.l.b16 %v221
    %v576 = vunpack.c.h.b16 %v221
    %v577 = vunpack.c.l.b16 %v222
    %v578 = vunpack.c.h.b16 %v222
    %v579 = vunpack.c.l.b16 %v223
    %v580 = vunpack.c.h.b16 %v223
    %v581 = vunpack.c.l.b16 %v224
    %v582 = vunpack.c.h.b16 %v224
    %v583 = vunpack.c.l.b16 %v225
    %v584 = vunpack.c.h.b16 %v225
    %v585 = vunpack.c.l.b16 %v226
    %v586 = vunpack.c.h.b16 %v226
    %v587 = vunpack.c.l.b16 %v227
    %v588 = vunpack.c.h.b16 %v227
    %v589 = vunpack.c.l.b16 %v228
    %v590 = vunpack.c.h.b16 %v228
    %v591 = vunpack.c.l.b16 %v229
    %v592 = vunpack.c.h.b16 %v229
    %v593 = vunpack.c.l.b16 %v230
    %v594 = vunpack.c.h.b16 %v230
    %v595 = vunpack.c.l.b16 %v231
    %v596 = vunpack.c.h.b16 %v231
    %v597 = vunpack.c.l.b16 %v232
    %v598 = vunpack.c.h.b16 %v232
    %v599 = vunpack.c.l.b16 %v233
    %v600 = vunpack.c.h.b16 %v233
    %v601 = vunpack.c.l.b16 %v234
    %v602 = vunpack.c.h.b16 %v234
    %v603 = vunpack.c.l.b16 %v235
    %v604 = vunpack.c.h.b16 %v235
    %v605 = vunpack.c.l.b16 %v236
    %v606 = vunpack.c.h.b16 %v236
    %v607 = vunpack.c.l.b16 %v237
    %v608 = vunpack.c.h.b16 %v237
    %v609 = vunpack.c.l.b16 %v238
    %v610 = vunpack.c.h.b16 %v238
    %v611 = vunpack.c.l.b16 %v239
    %v612 = vunpack.c.h.b16 %v239
    %v613 = vunpack.c.l.b16 %v240
    %v614 = vunpack.c.h.b16 %v240
    %v615 = vunpack.c.l.b16 %v241
    %v616 = vunpack.c.h.b16 %v241
    %v617 = vunpack.c.l.b16 %v242
    %v618 = vunpack.c.h.b16 %v242
    %v619 = vunpack.c.l.b16 %v243
    %v620 = vunpack.c.h.b16 %v243
    %v621 = vunpack.c.l.b16 %v244
    %v622 = vunpack.c.h.b16 %v244
    %v623 = vunpack.c.l.b16 %v245
    %v624 = vunpack.c.h.b16 %v245
    %v625 = vunpack.c.l.b16 %v246
    %v626 = vunpack.c.h.b16 %v246
    %v627 = vunpack.c.l.b16 %v247
    %v628 = vunpack.c.h.b16 %v247
    %v629 = vunpack.c.l.b16 %v248
    %v630 = vunpack.c.h.b16 %v248
    %v631 = vunpack.c.l.b16 %v249
    %v632 = vunpack.c.h.b16 %v249
    %v633 = vunpack.c.l.b16 %v250
    %v634 = vunpack.c.h.b16 %v250
    %v635 = vunpack.c.l.b16 %v251
    %v636 = vunpack.c.h.b16 %v251
    %v637 = vunpack.c.l.b16 %v252
    %v638 = vunpack.c.h.b16 %v252
    %v639 = vunpack.c.l.b16 %v253
    %v640 = vunpack.c.h.b16 %v253
    %v641 = vunpack.c.l.b16 %v254
    %v642 = vunpack.c.h.b16 %v254
    %v643 = vunpack.c.l.b16 %v255
    %v644 = vunpack.c.h.b16 %v255
    %v645 = vunpack.c.l.b16 %v256
    %v646 = vunpack.c.h.b16 %v256
    %v647 = vunpack.c.l.b16 %v257
    %v648 = vunpack.c.h.b16 %v257
    %v649 = vunpack.c.l.b16 %v258
    %v650 = vunpack.c.h.b16 %v258
    %v651 = vunpack.c.l.b16 %v259
    %v652 = vunpack.c.h.b16 %v259
    %v653 = vunpack.c.l.b16 %v260
    %v654 = vunpack.c.h.b16 %v260
    %v655 = vunpack.c.l.b16 %v261
    %v656 = vunpack.c.h.b16 %v261
    %v657 = vunpack.c.l.b16 %v262
    %v658 = vunpack.c.h.b16 %v262
    %v659 = vpack.c.b16 %v405, %v403
    %v660 = vpack.c.b16 %v406, %v404
    %v661 = vpack.c.b16 %v409, %v407
    %v662 = vpack.c.b16 %v410, %v408
    %v663 = vpack.c.b16 %v413, %v411
    %v664 = vpack.c.b16 %v414, %v412
    %v665 = vpack.c.b16 %v417, %v415
    %v666 = vpack.c.b16 %v418, %v416
    %v667 = vpack.c.b16 %v421, %v419
    %v668 = vpack.c.b16 %v422, %v420
    %v669 = vpack.c.b16 %v425, %v423
    %v670 = vpack.c.b16 %v426, %v424
    %v671 = vpack.c.b16 %v429, %v427
    %v672 = vpack.c.b16 %v430, %v428
    %v673 = vpack.c.b16 %v433, %v431
    %v674 = vpack.c.b16 %v434, %v432
    %v675 = vpack.c.b16 %v437, %v435
    %v676 = vpack.c.b16 %v438, %v436
    %v677 = vpack.c.b16 %v441, %v439
    %v678 = vpack.c.b16 %v442, %v440
    %v679 = vpack.c.b16 %v445, %v443
    %v680 = vpack.c.b16 %v446, %v444
    %v681 = vpack.c.b16 %v449, %v447
    %v682 = vpack.c.b16 %v450, %v448
    %v683 = vpack.c.b16 %v453, %v451
    %v684 = vpack.c.b16 %v454, %v452
    %v685 = vpack.c.b16 %v457, %v455
    %v686 = vpack.c.b16 %v458, %v456
    %v687 = vpack.c.b16 %v461, %v459
    %v688 = vpack.c.b16 %v462, %v460
    %v689 = vpack.c.b16 %v465, %v463
    %v690 = vpack.c.b16 %v466, %v464
    %v691 = vpack.c.b16 %v469, %v467
    %v692 = vpack.c.b16 %v470, %v468
    %v693 = vpack.c.b16 %v473, %v471
    %v694 = vpack.c.b16 %v474, %v472
    %v695 = vpack.c.b16 %v477, %v475
    %v696 = vpack.c.b16 %v478, %v476
    %v697 = vpack.c.b16 %v481, %v479
    %v698 = vpack.c.b16 %v482, %v480
    %v699 = vpack.c.b16 %v485, %v483
    %v700 = vpack.c.b16 %v486, %v484
    %v701 = vpack.c.b16 %v489, %v487
    %v702 = vpack.c.b16 %v490, %v488
    %v703 = vpack.c.b16 %v493, %v491
    %v704 = vpack.c.b16 %v494, %v492
    %v705 = vpack.c.b16 %v497, %v495
    %v706 = vpack.c.b16 %v498, %v496
    %v707 = vpack.c.b16 %v501, %v499
    %v708 = vpack.c.b16 %v502, %v500
    %v709 = vpack.c.b16 %v505, %v503
    %v710 = vpack.c.b16 %v506, %v504
    %v711 = vpack.c.b16 %v509, %v507
    %v712 = vpack.c.b16 %v510, %v508
    %v713 = vpack.c.b16 %v513, %v511
    %v714 = vpack.c.b16 %v514, %v512
    %v715 = vpack.c.b16 %v517, %v515
    %v716 = vpack.c.b16 %v518, %v516
    %v717 = vpack.c.b16 %v521, %v519
    %v718 = vpack.c.b16 %v522, %v520
    %v719 = vpack.c.b16 %v525, %v523
    %v720 = vpack.c.b16 %v526, %v524
    %v721 = vpack.c.b16 %v529, %v527
    %v722 = vpack.c.b16 %v530, %v528
    %v723 = vpack.c.b16 %v533, %v531
    %v724 = vpack.c.b16 %v534, %v532
    %v725 = vpack.c.b16 %v537, %v535
    %v726 = vpack.c.b16 %v538, %v536
    %v727 = vpack.c.b16 %v541, %v539
    %v728 = vpack.c.b16 %v542, %v540
    %v729 = vpack.c.b16 %v545, %v543
    %v730 = vpack.c.b16 %v546, %v544
    %v731 = vpack.c.b16 %v549, %v547
    %v732 = vpack.c.b16 %v550, %v548
    %v733 = vpack.c.b16 %v553, %v551
    %v734 = vpack.c.b16 %v554, %v552
    %v735 = vpack.c.b16 %v557, %v555
    %v736 = vpack.c.b16 %v558, %v556
    %v737 = vpack.c.b16 %v561, %v559
    %v738 = vpack.c.b16 %v562, %v560
    %v739 = vpack.c.b16 %v565, %v563
    %v740 = vpack.c.b16 %v566, %v564
    %v741 = vpack.c.b16 %v569, %v567
    %v742 = vpack.c.b16 %v570, %v568
    %v743 = vpack.c.b16 %v573, %v571
    %v744 = vpack.c.b16 %v574, %v572
    %v745 = vpack.c.b16 %v577, %v575
    %v746 = vpack.c.b16 %v578, %v576
    %v747 = vpack.c.b16 %v581, %v579
    %v748 = vpack.c.b16 %v582, %v580
    %v749 = vpack.c.b16 %v585, %v583
    %v750 = vpack.c.b16 %v586, %v584
    %v751 = vpack.c.b16 %v589, %v587
    %v752 = vpack.c.b16 %v590, %v588
    %v753 = vpack.c.b16 %v593, %v591
    %v754 = vpack.c.b16 %v594, %v592
    %v755 = vpack.c.b16 %v597, %v595
    %v756 = vpack.c.b16 %v598, %v596
    %v757 = vpack.c.b16 %v601, %v599
    %v758 = vpack.c.b16 %v602, %v600
    %v759 = vpack.c.b16 %v605, %v603
    %v760 = vpack.c.b16 %v606, %v604
    %v761 = vpack.c.b16 %v609, %v607
    %v762 = vpack.c.b16 %v610, %v608
    %v763 = vpack.c.b16 %v613, %v611
    %v764 = vpack.c.b16 %v614, %v612
    %v765 = vpack.c.b16 %v617, %v615
    %v766 = vpack.c.b16 %v618, %v616
    %v767 = vpack.c.b16 %v621, %v619
    %v768 = vpack.c.b16 %v622, %v620
    %v769 = vpack.c.b16 %v625, %v623
    %v770 = vpack.c.b16 %v626, %v624
    %v771 = vpack.c.b16 %v629, %v627
    %v772 = vpack.c.b16 %v630, %v628
    %v773 = vpack.c.b16 %v633, %v631
    %v774 = vpack.c.b16 %v634, %v632
    %v775 = vpack.c.b16 %v637, %v635
    %v776 = vpack.c.b16 %v638, %v636
    %v777 = vpack.c.b16 %v641, %v639
    %v778 = vpack.c.b16 %v642, %v640
    %v779 = vpack.c.b16 %v645, %v643
    %v780 = vpack.c.b16 %v646, %v644
    %v781 = vpack.c.b16 %v649, %v647
    %v782 = vpack.c.b16 %v650, %v648
    %v783 = vpack.c.b16 %v653, %v651
    %v784 = vpack.c.b16 %v654, %v652
    %v785 = vpack.c.b16 %v657, %v655
    %v786 = vpack.c.b16 %v658, %v656
    %915 = vmatprep.subr.bf16.mxu0 %v674
    %916 = vmatpush1.bf16.msra.mxu0 %v673
    %917 = vmatprep.subr.bf16.mxu0 %v672
    %918 = vmatpush1.bf16.msra.mxu0 %v671
    %919 = vmatprep.subr.bf16.mxu0 %v670
    %920 = vmatpush1.bf16.msra.mxu0 %v669
    %921 = vmatprep.subr.bf16.mxu0 %v668
    %922 = vmatpush1.bf16.msra.mxu0 %v667
    %923 = vmatprep.subr.bf16.mxu0 %v666
    %924 = vmatpush1.bf16.msra.mxu0 %v665
    %925 = vmatprep.subr.bf16.mxu0 %v664
    %926 = vmatpush1.bf16.msra.mxu0 %v663
    %927 = vmatprep.subr.bf16.mxu0 %v662
    %928 = vmatpush1.bf16.msra.mxu0 %v661
    %929 = vmatprep.subr.bf16.mxu0 %v660
    %930 = vmatpush1.bf16.msra.mxu0 %v659
    %931 = vmatprep.subr.bf16.mxu0 %v690
    %932 = vmatpush2.bf16.msra.mxu0 %v689
    %933 = vmatprep.subr.bf16.mxu0 %v688
    %934 = vmatpush2.bf16.msra.mxu0 %v687
    %935 = vmatprep.subr.bf16.mxu0 %v686
    %936 = vmatpush2.bf16.msra.mxu0 %v685
    %937 = vmatprep.subr.bf16.mxu0 %v684
    %938 = vmatpush2.bf16.msra.mxu0 %v683
    %939 = vmatprep.subr.bf16.mxu0 %v682
    %940 = vmatpush2.bf16.msra.mxu0 %v681
    %941 = vmatprep.subr.bf16.mxu0 %v680
    %942 = vmatpush2.bf16.msra.mxu0 %v679
    %943 = vmatprep.subr.bf16.mxu0 %v678
    %944 = vmatpush2.bf16.msra.mxu0 %v677
    %945 = vmatprep.subr.bf16.mxu0 %v676
    %946 = vmatpush2.bf16.msra.mxu0 %v675
    %947 = vmatprep.mubr.bf16.mxu0 %v128
    %948 = vmatmul.mubr.bf16.gmra.mxu0 %v127
    %v949 = vpop.f32.mrf.mxu0
    %v950 = vadd.f32 %v268, %v949
    %v951 = vpop.f32.mrf.mxu0
    %v952 = vadd.f32 %v272, %v951
    %v953 = vpop.f32.mrf.mxu0
    %v954 = vpop.f32.mrf.mxu0
    %955 = vdwg.mxu0
    %956 = vmatprep.subr.bf16.mxu0 %v706
    %957 = vmatpush1.bf16.msra.mxu0 %v705
    %958 = vmatprep.subr.bf16.mxu0 %v704
    %959 = vmatpush1.bf16.msra.mxu0 %v703
    %960 = vmatprep.subr.bf16.mxu0 %v702
    %961 = vmatpush1.bf16.msra.mxu0 %v701
    %962 = vmatprep.subr.bf16.mxu0 %v700
    %963 = vmatpush1.bf16.msra.mxu0 %v699
    %964 = vmatprep.subr.bf16.mxu0 %v698
    %965 = vmatpush1.bf16.msra.mxu0 %v697
    %966 = vmatprep.subr.bf16.mxu0 %v696
    %967 = vmatpush1.bf16.msra.mxu0 %v695
    %968 = vmatprep.subr.bf16.mxu0 %v694
    %969 = vmatpush1.bf16.msra.mxu0 %v693
    %970 = vmatprep.subr.bf16.mxu0 %v692
    %971 = vmatpush1.bf16.msra.mxu0 %v691
    %972 = vmatprep.subr.bf16.mxu0 %v722
    %973 = vmatpush2.bf16.msra.mxu0 %v721
    %974 = vmatprep.subr.bf16.mxu0 %v720
    %975 = vmatpush2.bf16.msra.mxu0 %v719
    %976 = vmatprep.subr.bf16.mxu0 %v718
    %977 = vmatpush2.bf16.msra.mxu0 %v717
    %978 = vmatprep.subr.bf16.mxu0 %v716
    %979 = vmatpush2.bf16.msra.mxu0 %v715
    %980 = vmatprep.subr.bf16.mxu0 %v714
    %981 = vmatpush2.bf16.msra.mxu0 %v713
    %982 = vmatprep.subr.bf16.mxu0 %v712
    %983 = vmatpush2.bf16.msra.mxu0 %v711
    %984 = vmatprep.subr.bf16.mxu0 %v710
    %985 = vmatpush2.bf16.msra.mxu0 %v709
    %986 = vmatprep.subr.bf16.mxu0 %v708
    %987 = vmatpush2.bf16.msra.mxu0 %v707
    %988 = vmatprep.mubr.bf16.mxu0 %v130
    %989 = vmatmul.mubr.bf16.gmra.mxu0 %v129
    %v990 = vpop.f32.mrf.mxu0
    %v991 = vadd.f32 %v950, %v990
    %v992 = vpop.f32.mrf.mxu0
    %v993 = vadd.f32 %v952, %v992
    %v994 = vpop.f32.mrf.mxu0
    %v995 = vpop.f32.mrf.mxu0
    %996 = vdwg.mxu0
    %997 = vmatprep.subr.bf16.mxu0 %v738
    %998 = vmatpush1.bf16.msra.mxu0 %v737
    %999 = vmatprep.subr.bf16.mxu0 %v736
    %1000 = vmatpush1.bf16.msra.mxu0 %v735
    %1001 = vmatprep.subr.bf16.mxu0 %v734
    %1002 = vmatpush1.bf16.msra.mxu0 %v733
    %1003 = vmatprep.subr.bf16.mxu0 %v732
    %1004 = vmatpush1.bf16.msra.mxu0 %v731
    %1005 = vmatprep.subr.bf16.mxu0 %v730
    %1006 = vmatpush1.bf16.msra.mxu0 %v729
    %1007 = vmatprep.subr.bf16.mxu0 %v728
    %1008 = vmatpush1.bf16.msra.mxu0 %v727
    %1009 = vmatprep.subr.bf16.mxu0 %v726
    %1010 = vmatpush1.bf16.msra.mxu0 %v725
    %1011 = vmatprep.subr.bf16.mxu0 %v724
    %1012 = vmatpush1.bf16.msra.mxu0 %v723
    %1013 = vmatprep.subr.bf16.mxu0 %v754
    %1014 = vmatpush2.bf16.msra.mxu0 %v753
    %1015 = vmatprep.subr.bf16.mxu0 %v752
    %1016 = vmatpush2.bf16.msra.mxu0 %v751
    %1017 = vmatprep.subr.bf16.mxu0 %v750
    %1018 = vmatpush2.bf16.msra.mxu0 %v749
    %1019 = vmatprep.subr.bf16.mxu0 %v748
    %1020 = vmatpush2.bf16.msra.mxu0 %v747
    %1021 = vmatprep.subr.bf16.mxu0 %v746
    %1022 = vmatpush2.bf16.msra.mxu0 %v745
    %1023 = vmatprep.subr.bf16.mxu0 %v744
    %1024 = vmatpush2.bf16.msra.mxu0 %v743
    %1025 = vmatprep.subr.bf16.mxu0 %v742
    %1026 = vmatpush2.bf16.msra.mxu0 %v741
    %1027 = vmatprep.subr.bf16.mxu0 %v740
    %1028 = vmatpush2.bf16.msra.mxu0 %v739
    %1029 = vmatprep.mubr.bf16.mxu0 %v132
    %1030 = vmatmul.mubr.bf16.gmra.mxu0 %v131
    %v1031 = vpop.f32.mrf.mxu0
    %v1032 = vadd.f32 %v991, %v1031
    %v1033 = vpop.f32.mrf.mxu0
    %v1034 = vadd.f32 %v993, %v1033
    %v1035 = vpop.f32.mrf.mxu0
    %v1036 = vpop.f32.mrf.mxu0
    %1037 = vdwg.mxu0
    %1038 = vmatprep.subr.bf16.mxu0 %v770
    %1039 = vmatpush1.bf16.msra.mxu0 %v769
    %1040 = vmatprep.subr.bf16.mxu0 %v768
    %1041 = vmatpush1.bf16.msra.mxu0 %v767
    %1042 = vmatprep.subr.bf16.mxu0 %v766
    %1043 = vmatpush1.bf16.msra.mxu0 %v765
    %1044 = vmatprep.subr.bf16.mxu0 %v764
    %1045 = vmatpush1.bf16.msra.mxu0 %v763
    %1046 = vmatprep.subr.bf16.mxu0 %v762
    %1047 = vmatpush1.bf16.msra.mxu0 %v761
    %1048 = vmatprep.subr.bf16.mxu0 %v760
    %1049 = vmatpush1.bf16.msra.mxu0 %v759
    %1050 = vmatprep.subr.bf16.mxu0 %v758
    %1051 = vmatpush1.bf16.msra.mxu0 %v757
    %1052 = vmatprep.subr.bf16.mxu0 %v756
    %1053 = vmatpush1.bf16.msra.mxu0 %v755
    %1054 = vmatprep.subr.bf16.mxu0 %v786
    %1055 = vmatpush2.bf16.msra.mxu0 %v785
    %1056 = vmatprep.subr.bf16.mxu0 %v784
    %1057 = vmatpush2.bf16.msra.mxu0 %v783
    %1058 = vmatprep.subr.bf16.mxu0 %v782
    %1059 = vmatpush2.bf16.msra.mxu0 %v781
    %1060 = vmatprep.subr.bf16.mxu0 %v780
    %1061 = vmatpush2.bf16.msra.mxu0 %v779
    %1062 = vmatprep.subr.bf16.mxu0 %v778
    %1063 = vmatpush2.bf16.msra.mxu0 %v777
    %1064 = vmatprep.subr.bf16.mxu0 %v776
    %1065 = vmatpush2.bf16.msra.mxu0 %v775
    %1066 = vmatprep.subr.bf16.mxu0 %v774
    %1067 = vmatpush2.bf16.msra.mxu0 %v773
    %1068 = vmatprep.subr.bf16.mxu0 %v772
    %1069 = vmatpush2.bf16.msra.mxu0 %v771
    %1070 = vmatprep.mubr.bf16.mxu0 %v134
    %1071 = vmatmul.mubr.bf16.gmra.mxu0 %v133
    %v1072 = vpop.f32.mrf.mxu0
    %v1073 = vadd.f32 %v1032, %v1072
    %v1074 = vpop.f32.mrf.mxu0
    %v1075 = vadd.f32 %v1034, %v1074
    %v1076 = vpop.f32.mrf.mxu0
    %v1077 = vpop.f32.mrf.mxu0
    %1078 = vdwg.mxu0
    %v1079 = vmax.f32 %v1073, 0.0
    %v1080 = vmax.f32 %v1075, 0.0
    %v1081 = vpack.c.bf16 %v1079, %v1079
    %v1082 = vpack.c.bf16 %v1080, %v1080
    %v1083 = vld [vmem:[#allocation7] sm:$0xff]
    %v1084 = vld [vmem:[#allocation7 + $0x8] sm:$0xff]
    %v1085 = vld [vmem:[#allocation7 + $0x10] sm:$0xff]
    %v1086 = vld [vmem:[#allocation7 + $0x18] sm:$0xff]
    %v1087 = vld [vmem:[#allocation7 + $0x20] sm:$0xff]
    %v1088 = vld [vmem:[#allocation7 + $0x28] sm:$0xff]
    %v1089 = vld [vmem:[#allocation7 + $0x30] sm:$0xff]
    %v1090 = vld [vmem:[#allocation7 + $0x38] sm:$0xff]
    %v1091 = vld [vmem:[#allocation7 + $0x40] sm:$0xff]
    %v1092 = vld [vmem:[#allocation7 + $0x48] sm:$0xff]
    %v1093 = vld [vmem:[#allocation7 + $0x50] sm:$0xff]
    %v1094 = vld [vmem:[#allocation7 + $0x58] sm:$0xff]
    %v1095 = vld [vmem:[#allocation7 + $0x60] sm:$0xff]
    %v1096 = vld [vmem:[#allocation7 + $0x68] sm:$0xff]
    %v1097 = vld [vmem:[#allocation7 + $0x70] sm:$0xff]
    %v1098 = vld [vmem:[#allocation7 + $0x78] sm:$0xff]
    %v1099 = vld [vmem:[#allocation7 + $0x80] sm:$0xff]
    %v1100 = vld [vmem:[#allocation7 + $0x88] sm:$0xff]
    %v1101 = vld [vmem:[#allocation7 + $0x90] sm:$0xff]
    %v1102 = vld [vmem:[#allocation7 + $0x98] sm:$0xff]
    %v1103 = vld [vmem:[#allocation7 + $0xa0] sm:$0xff]
    %v1104 = vld [vmem:[#allocation7 + $0xa8] sm:$0xff]
    %v1105 = vld [vmem:[#allocation7 + $0xb0] sm:$0xff]
    %v1106 = vld [vmem:[#allocation7 + $0xb8] sm:$0xff]
    %v1107 = vld [vmem:[#allocation7 + $0xc0] sm:$0xff]
    %v1108 = vld [vmem:[#allocation7 + $0xc8] sm:$0xff]
    %v1109 = vld [vmem:[#allocation7 + $0xd0] sm:$0xff]
    %v1110 = vld [vmem:[#allocation7 + $0xd8] sm:$0xff]
    %v1111 = vld [vmem:[#allocation7 + $0xe0] sm:$0xff]
    %v1112 = vld [vmem:[#allocation7 + $0xe8] sm:$0xff]
    %v1113 = vld [vmem:[#allocation7 + $0xf0] sm:$0xff]
    %v1114 = vld [vmem:[#allocation7 + $0xf8] sm:$0xff]
    %v1115 = vld [vmem:[#allocation7 + $0x100] sm:$0xff]
    %v1116 = vld [vmem:[#allocation7 + $0x108] sm:$0xff]
    %v1117 = vld [vmem:[#allocation7 + $0x110] sm:$0xff]
    %v1118 = vld [vmem:[#allocation7 + $0x118] sm:$0xff]
    %v1119 = vld [vmem:[#allocation7 + $0x120] sm:$0xff]
    %v1120 = vld [vmem:[#allocation7 + $0x128] sm:$0xff]
    %v1121 = vld [vmem:[#allocation7 + $0x130] sm:$0xff]
    %v1122 = vld [vmem:[#allocation7 + $0x138] sm:$0xff]
    %v1123 = vld [vmem:[#allocation7 + $0x140] sm:$0xff]
    %v1124 = vld [vmem:[#allocation7 + $0x148] sm:$0xff]
    %v1125 = vld [vmem:[#allocation7 + $0x150] sm:$0xff]
    %v1126 = vld [vmem:[#allocation7 + $0x158] sm:$0xff]
    %v1127 = vld [vmem:[#allocation7 + $0x160] sm:$0xff]
    %v1128 = vld [vmem:[#allocation7 + $0x168] sm:$0xff]
    %v1129 = vld [vmem:[#allocation7 + $0x170] sm:$0xff]
    %v1130 = vld [vmem:[#allocation7 + $0x178] sm:$0xff]
    %v1131 = vld [vmem:[#allocation7 + $0x180] sm:$0xff]
    %v1132 = vld [vmem:[#allocation7 + $0x188] sm:$0xff]
    %v1133 = vld [vmem:[#allocation7 + $0x190] sm:$0xff]
    %v1134 = vld [vmem:[#allocation7 + $0x198] sm:$0xff]
    %v1135 = vld [vmem:[#allocation7 + $0x1a0] sm:$0xff]
    %v1136 = vld [vmem:[#allocation7 + $0x1a8] sm:$0xff]
    %v1137 = vld [vmem:[#allocation7 + $0x1b0] sm:$0xff]
    %v1138 = vld [vmem:[#allocation7 + $0x1b8] sm:$0xff]
    %v1139 = vld [vmem:[#allocation7 + $0x1c0] sm:$0xff]
    %v1140 = vld [vmem:[#allocation7 + $0x1c8] sm:$0xff]
    %v1141 = vld [vmem:[#allocation7 + $0x1d0] sm:$0xff]
    %v1142 = vld [vmem:[#allocation7 + $0x1d8] sm:$0xff]
    %v1143 = vld [vmem:[#allocation7 + $0x1e0] sm:$0xff]
    %v1144 = vld [vmem:[#allocation7 + $0x1e8] sm:$0xff]
    %v1145 = vld [vmem:[#allocation7 + $0x1f0] sm:$0xff]
    %v1146 = vld [vmem:[#allocation7 + $0x1f8] sm:$0xff]
    %v1147 = vld [vmem:[%s4] sm:$0xf]
    %v1149 = vlaneseq
    %v1150 = vshrl.u32 %v1149, 7
    %v1151 = vsub.s32 0, %v1150
    %v1152 = vrot.slane %v1147, %v1151
    %v1153 = vlaneseq
    %v1154 = vshrl.u32 %v1153, 7
    %v1155 = vsub.s32 1, %v1154
    %v1156 = vrot.slane %v1147, %v1155
    %v1157 = vlaneseq
    %v1158 = vshrl.u32 %v1157, 7
    %v1159 = vsub.s32 2, %v1158
    %v1160 = vrot.slane %v1147, %v1159
    %v1161 = vlaneseq
    %v1162 = vshrl.u32 %v1161, 7
    %v1163 = vsub.s32 3, %v1162
    %v1164 = vrot.slane %v1147, %v1163
    %v1233 = vunpack.c.l.b16 %v1083
    %v1234 = vunpack.c.h.b16 %v1083
    %v1235 = vunpack.c.l.b16 %v1084
    %v1236 = vunpack.c.h.b16 %v1084
    %v1237 = vunpack.c.l.b16 %v1085
    %v1238 = vunpack.c.h.b16 %v1085
    %v1239 = vunpack.c.l.b16 %v1086
    %v1240 = vunpack.c.h.b16 %v1086
    %v1241 = vunpack.c.l.b16 %v1087
    %v1242 = vunpack.c.h.b16 %v1087
    %v1243 = vunpack.c.l.b16 %v1088
    %v1244 = vunpack.c.h.b16 %v1088
    %v1245 = vunpack.c.l.b16 %v1089
    %v1246 = vunpack.c.h.b16 %v1089
    %v1247 = vunpack.c.l.b16 %v1090
    %v1248 = vunpack.c.h.b16 %v1090
    %v1249 = vunpack.c.l.b16 %v1091
    %v1250 = vunpack.c.h.b16 %v1091
    %v1251 = vunpack.c.l.b16 %v1092
    %v1252 = vunpack.c.h.b16 %v1092
    %v1253 = vunpack.c.l.b16 %v1093
    %v1254 = vunpack.c.h.b16 %v1093
    %v1255 = vunpack.c.l.b16 %v1094
    %v1256 = vunpack.c.h.b16 %v1094
    %v1257 = vunpack.c.l.b16 %v1095
    %v1258 = vunpack.c.h.b16 %v1095
    %v1259 = vunpack.c.l.b16 %v1096
    %v1260 = vunpack.c.h.b16 %v1096
    %v1261 = vunpack.c.l.b16 %v1097
    %v1262 = vunpack.c.h.b16 %v1097
    %v1263 = vunpack.c.l.b16 %v1098
    %v1264 = vunpack.c.h.b16 %v1098
    %v1265 = vunpack.c.l.b16 %v1099
    %v1266 = vunpack.c.h.b16 %v1099
    %v1267 = vunpack.c.l.b16 %v1100
    %v1268 = vunpack.c.h.b16 %v1100
    %v1269 = vunpack.c.l.b16 %v1101
    %v1270 = vunpack.c.h.b16 %v1101
    %v1271 = vunpack.c.l.b16 %v1102
    %v1272 = vunpack.c.h.b16 %v1102
    %v1273 = vunpack.c.l.b16 %v1103
    %v1274 = vunpack.c.h.b16 %v1103
    %v1275 = vunpack.c.l.b16 %v1104
    %v1276 = vunpack.c.h.b16 %v1104
    %v1277 = vunpack.c.l.b16 %v1105
    %v1278 = vunpack.c.h.b16 %v1105
    %v1279 = vunpack.c.l.b16 %v1106
    %v1280 = vunpack.c.h.b16 %v1106
    %v1281 = vunpack.c.l.b16 %v1107
    %v1282 = vunpack.c.h.b16 %v1107
    %v1283 = vunpack.c.l.b16 %v1108
    %v1284 = vunpack.c.h.b16 %v1108
    %v1285 = vunpack.c.l.b16 %v1109
    %v1286 = vunpack.c.h.b16 %v1109
    %v1287 = vunpack.c.l.b16 %v1110
    %v1288 = vunpack.c.h.b16 %v1110
    %v1289 = vunpack.c.l.b16 %v1111
    %v1290 = vunpack.c.h.b16 %v1111
    %v1291 = vunpack.c.l.b16 %v1112
    %v1292 = vunpack.c.h.b16 %v1112
    %v1293 = vunpack.c.l.b16 %v1113
    %v1294 = vunpack.c.h.b16 %v1113
    %v1295 = vunpack.c.l.b16 %v1114
    %v1296 = vunpack.c.h.b16 %v1114
    %v1297 = vunpack.c.l.b16 %v1115
    %v1298 = vunpack.c.h.b16 %v1115
    %v1299 = vunpack.c.l.b16 %v1116
    %v1300 = vunpack.c.h.b16 %v1116
    %v1301 = vunpack.c.l.b16 %v1117
    %v1302 = vunpack.c.h.b16 %v1117
    %v1303 = vunpack.c.l.b16 %v1118
    %v1304 = vunpack.c.h.b16 %v1118
    %v1305 = vunpack.c.l.b16 %v1119
    %v1306 = vunpack.c.h.b16 %v1119
    %v1307 = vunpack.c.l.b16 %v1120
    %v1308 = vunpack.c.h.b16 %v1120
    %v1309 = vunpack.c.l.b16 %v1121
    %v1310 = vunpack.c.h.b16 %v1121
    %v1311 = vunpack.c.l.b16 %v1122
    %v1312 = vunpack.c.h.b16 %v1122
    %v1313 = vunpack.c.l.b16 %v1123
    %v1314 = vunpack.c.h.b16 %v1123
    %v1315 = vunpack.c.l.b16 %v1124
    %v1316 = vunpack.c.h.b16 %v1124
    %v1317 = vunpack.c.l.b16 %v1125
    %v1318 = vunpack.c.h.b16 %v1125
    %v1319 = vunpack.c.l.b16 %v1126
    %v1320 = vunpack.c.h.b16 %v1126
    %v1321 = vunpack.c.l.b16 %v1127
    %v1322 = vunpack.c.h.b16 %v1127
    %v1323 = vunpack.c.l.b16 %v1128
    %v1324 = vunpack.c.h.b16 %v1128
    %v1325 = vunpack.c.l.b16 %v1129
    %v1326 = vunpack.c.h.b16 %v1129
    %v1327 = vunpack.c.l.b16 %v1130
    %v1328 = vunpack.c.h.b16 %v1130
    %v1329 = vunpack.c.l.b16 %v1131
    %v1330 = vunpack.c.h.b16 %v1131
    %v1331 = vunpack.c.l.b16 %v1132
    %v1332 = vunpack.c.h.b16 %v1132
    %v1333 = vunpack.c.l.b16 %v1133
    %v1334 = vunpack.c.h.b16 %v1133
    %v1335 = vunpack.c.l.b16 %v1134
    %v1336 = vunpack.c.h.b16 %v1134
    %v1337 = vunpack.c.l.b16 %v1135
    %v1338 = vunpack.c.h.b16 %v1135
    %v1339 = vunpack.c.l.b16 %v1136
    %v1340 = vunpack.c.h.b16 %v1136
    %v1341 = vunpack.c.l.b16 %v1137
    %v1342 = vunpack.c.h.b16 %v1137
    %v1343 = vunpack.c.l.b16 %v1138
    %v1344 = vunpack.c.h.b16 %v1138
    %v1345 = vunpack.c.l.b16 %v1139
    %v1346 = vunpack.c.h.b16 %v1139
    %v1347 = vunpack.c.l.b16 %v1140
    %v1348 = vunpack.c.h.b16 %v1140
    %v1349 = vunpack.c.l.b16 %v1141
    %v1350 = vunpack.c.h.b16 %v1141
    %v1351 = vunpack.c.l.b16 %v1142
    %v1352 = vunpack.c.h.b16 %v1142
    %v1353 = vunpack.c.l.b16 %v1143
    %v1354 = vunpack.c.h.b16 %v1143
    %v1355 = vunpack.c.l.b16 %v1144
    %v1356 = vunpack.c.h.b16 %v1144
    %v1357 = vunpack.c.l.b16 %v1145
    %v1358 = vunpack.c.h.b16 %v1145
    %v1359 = vunpack.c.l.b16 %v1146
    %v1360 = vunpack.c.h.b16 %v1146
    %v1361 = vpack.c.b16 %v1237, %v1233
    %v1362 = vpack.c.b16 %v1238, %v1234
    %v1363 = vpack.c.b16 %v1239, %v1235
    %v1364 = vpack.c.b16 %v1240, %v1236
    %v1365 = vpack.c.b16 %v1245, %v1241
    %v1366 = vpack.c.b16 %v1246, %v1242
    %v1367 = vpack.c.b16 %v1247, %v1243
    %v1368 = vpack.c.b16 %v1248, %v1244
    %v1369 = vpack.c.b16 %v1253, %v1249
    %v1370 = vpack.c.b16 %v1254, %v1250
    %v1371 = vpack.c.b16 %v1255, %v1251
    %v1372 = vpack.c.b16 %v1256, %v1252
    %v1373 = vpack.c.b16 %v1261, %v1257
    %v1374 = vpack.c.b16 %v1262, %v1258
    %v1375 = vpack.c.b16 %v1263, %v1259
    %v1376 = vpack.c.b16 %v1264, %v1260
    %v1377 = vpack.c.b16 %v1269, %v1265
    %v1378 = vpack.c.b16 %v1270, %v1266
    %v1379 = vpack.c.b16 %v1271, %v1267
    %v1380 = vpack.c.b16 %v1272, %v1268
    %v1381 = vpack.c.b16 %v1277, %v1273
    %v1382 = vpack.c.b16 %v1278, %v1274
    %v1383 = vpack.c.b16 %v1279, %v1275
    %v1384 = vpack.c.b16 %v1280, %v1276
    %v1385 = vpack.c.b16 %v1285, %v1281
    %v1386 = vpack.c.b16 %v1286, %v1282
    %v1387 = vpack.c.b16 %v1287, %v1283
    %v1388 = vpack.c.b16 %v1288, %v1284
    %v1389 = vpack.c.b16 %v1293, %v1289
    %v1390 = vpack.c.b16 %v1294, %v1290
    %v1391 = vpack.c.b16 %v1295, %v1291
    %v1392 = vpack.c.b16 %v1296, %v1292
    %v1393 = vpack.c.b16 %v1301, %v1297
    %v1394 = vpack.c.b16 %v1302, %v1298
    %v1395 = vpack.c.b16 %v1303, %v1299
    %v1396 = vpack.c.b16 %v1304, %v1300
    %v1397 = vpack.c.b16 %v1309, %v1305
    %v1398 = vpack.c.b16 %v1310, %v1306
    %v1399 = vpack.c.b16 %v1311, %v1307
    %v1400 = vpack.c.b16 %v1312, %v1308
    %v1401 = vpack.c.b16 %v1317, %v1313
    %v1402 = vpack.c.b16 %v1318, %v1314
    %v1403 = vpack.c.b16 %v1319, %v1315
    %v1404 = vpack.c.b16 %v1320, %v1316
    %v1405 = vpack.c.b16 %v1325, %v1321
    %v1406 = vpack.c.b16 %v1326, %v1322
    %v1407 = vpack.c.b16 %v1327, %v1323
    %v1408 = vpack.c.b16 %v1328, %v1324
    %v1409 = vpack.c.b16 %v1333, %v1329
    %v1410 = vpack.c.b16 %v1334, %v1330
    %v1411 = vpack.c.b16 %v1335, %v1331
    %v1412 = vpack.c.b16 %v1336, %v1332
    %v1413 = vpack.c.b16 %v1341, %v1337
    %v1414 = vpack.c.b16 %v1342, %v1338
    %v1415 = vpack.c.b16 %v1343, %v1339
    %v1416 = vpack.c.b16 %v1344, %v1340
    %v1417 = vpack.c.b16 %v1349, %v1345
    %v1418 = vpack.c.b16 %v1350, %v1346
    %v1419 = vpack.c.b16 %v1351, %v1347
    %v1420 = vpack.c.b16 %v1352, %v1348
    %v1421 = vpack.c.b16 %v1357, %v1353
    %v1422 = vpack.c.b16 %v1358, %v1354
    %v1423 = vpack.c.b16 %v1359, %v1355
    %v1424 = vpack.c.b16 %v1360, %v1356
    %1489 = vmatprep.subr.bf16.mxu0 %v1390
    %1490 = vmatpush1.bf16.msra.mxu0 %v1389
    %1491 = vmatprep.subr.bf16.mxu0 %v1386
    %1492 = vmatpush1.bf16.msra.mxu0 %v1385
    %1493 = vmatprep.subr.bf16.mxu0 %v1382
    %1494 = vmatpush1.bf16.msra.mxu0 %v1381
    %1495 = vmatprep.subr.bf16.mxu0 %v1378
    %1496 = vmatpush1.bf16.msra.mxu0 %v1377
    %1497 = vmatprep.subr.bf16.mxu0 %v1374
    %1498 = vmatpush1.bf16.msra.mxu0 %v1373
    %1499 = vmatprep.subr.bf16.mxu0 %v1370
    %1500 = vmatpush1.bf16.msra.mxu0 %v1369
    %1501 = vmatprep.subr.bf16.mxu0 %v1366
    %1502 = vmatpush1.bf16.msra.mxu0 %v1365
    %1503 = vmatprep.subr.bf16.mxu0 %v1362
    %1504 = vmatpush1.bf16.msra.mxu0 %v1361
    %1505 = vmatprep.subr.bf16.mxu0 %v1422
    %1506 = vmatpush2.bf16.msra.mxu0 %v1421
    %1507 = vmatprep.subr.bf16.mxu0 %v1418
    %1508 = vmatpush2.bf16.msra.mxu0 %v1417
    %1509 = vmatprep.subr.bf16.mxu0 %v1414
    %1510 = vmatpush2.bf16.msra.mxu0 %v1413
    %1511 = vmatprep.subr.bf16.mxu0 %v1410
    %1512 = vmatpush2.bf16.msra.mxu0 %v1409
    %1513 = vmatprep.subr.bf16.mxu0 %v1406
    %1514 = vmatpush2.bf16.msra.mxu0 %v1405
    %1515 = vmatprep.subr.bf16.mxu0 %v1402
    %1516 = vmatpush2.bf16.msra.mxu0 %v1401
    %1517 = vmatprep.subr.bf16.mxu0 %v1398
    %1518 = vmatpush2.bf16.msra.mxu0 %v1397
    %1519 = vmatprep.subr.bf16.mxu0 %v1394
    %1520 = vmatpush2.bf16.msra.mxu0 %v1393
    %1521 = vmatprep.mubr.bf16.mxu0 %v1082
    %1522 = vmatmul.mubr.bf16.gmra.mxu0 %v1081
    %v1523 = vpop.f32.mrf.mxu0
    %v1524 = vadd.f32 %v1152, %v1523
    %v1525 = vpop.f32.mrf.mxu0
    %v1526 = vadd.f32 %v1156, %v1525
    %v1527 = vpop.f32.mrf.mxu0
    %v1528 = vpop.f32.mrf.mxu0
    %1529 = vdwg.mxu0
    %1530 = vmatprep.subr.bf16.mxu0 %v1392
    %1531 = vmatpush1.bf16.msra.mxu0 %v1391
    %1532 = vmatprep.subr.bf16.mxu0 %v1388
    %1533 = vmatpush1.bf16.msra.mxu0 %v1387
    %1534 = vmatprep.subr.bf16.mxu0 %v1384
    %1535 = vmatpush1.bf16.msra.mxu0 %v1383
    %1536 = vmatprep.subr.bf16.mxu0 %v1380
    %1537 = vmatpush1.bf16.msra.mxu0 %v1379
    %1538 = vmatprep.subr.bf16.mxu0 %v1376
    %1539 = vmatpush1.bf16.msra.mxu0 %v1375
    %1540 = vmatprep.subr.bf16.mxu0 %v1372
    %1541 = vmatpush1.bf16.msra.mxu0 %v1371
    %1542 = vmatprep.subr.bf16.mxu0 %v1368
    %1543 = vmatpush1.bf16.msra.mxu0 %v1367
    %1544 = vmatprep.subr.bf16.mxu0 %v1364
    %1545 = vmatpush1.bf16.msra.mxu0 %v1363
    %1546 = vmatprep.subr.bf16.mxu0 %v1424
    %1547 = vmatpush2.bf16.msra.mxu0 %v1423
    %1548 = vmatprep.subr.bf16.mxu0 %v1420
    %1549 = vmatpush2.bf16.msra.mxu0 %v1419
    %1550 = vmatprep.subr.bf16.mxu0 %v1416
    %1551 = vmatpush2.bf16.msra.mxu0 %v1415
    %1552 = vmatprep.subr.bf16.mxu0 %v1412
    %1553 = vmatpush2.bf16.msra.mxu0 %v1411
    %1554 = vmatprep.subr.bf16.mxu0 %v1408
    %1555 = vmatpush2.bf16.msra.mxu0 %v1407
    %1556 = vmatprep.subr.bf16.mxu0 %v1404
    %1557 = vmatpush2.bf16.msra.mxu0 %v1403
    %1558 = vmatprep.subr.bf16.mxu0 %v1400
    %1559 = vmatpush2.bf16.msra.mxu0 %v1399
    %1560 = vmatprep.subr.bf16.mxu0 %v1396
    %1561 = vmatpush2.bf16.msra.mxu0 %v1395
    %1562 = vmatprep.mubr.bf16.mxu0 %v1082
    %1563 = vmatmul.mubr.bf16.gmra.mxu0 %v1081
    %v1564 = vpop.f32.mrf.mxu0
    %v1565 = vadd.f32 %v1160, %v1564
    %v1566 = vpop.f32.mrf.mxu0
    %v1567 = vadd.f32 %v1164, %v1566
    %v1568 = vpop.f32.mrf.mxu0
    %v1569 = vpop.f32.mrf.mxu0
    %1570 = vdwg.mxu0
    %v1571 = vmax.f32 %v1524, 0.0
    %v1572 = vmax.f32 %v1526, 0.0
    %v1573 = vmax.f32 %v1565, 0.0
    %v1574 = vmax.f32 %v1567, 0.0
    %v1575 = vpack.c.bf16 %v1571, %v1571
    %v1576 = vpack.c.bf16 %v1572, %v1572
    %v1577 = vpack.c.bf16 %v1573, %v1573
    %v1578 = vpack.c.bf16 %v1574, %v1574
    %v1579 = vld [vmem:[#allocation8] sm:$0xf]
    %v1580 = vld [vmem:[#allocation8 + $0x4] sm:$0xf]
    %v1581 = vld [vmem:[#allocation8 + $0x8] sm:$0xf]
    %v1582 = vld [vmem:[#allocation8 + $0xc] sm:$0xf]
    %v1583 = vld [vmem:[#allocation8 + $0x10] sm:$0xf]
    %v1584 = vld [vmem:[#allocation8 + $0x14] sm:$0xf]
    %v1585 = vld [vmem:[#allocation8 + $0x18] sm:$0xf]
    %v1586 = vld [vmem:[#allocation8 + $0x1c] sm:$0xf]
    %v1587 = vld [vmem:[#allocation8 + $0x20] sm:$0xf]
    %v1588 = vld [vmem:[#allocation8 + $0x24] sm:$0xf]
    %v1589 = vld [vmem:[#allocation8 + $0x28] sm:$0xf]
    %v1590 = vld [vmem:[#allocation8 + $0x2c] sm:$0xf]
    %v1591 = vld [vmem:[#allocation8 + $0x30] sm:$0xf]
    %v1592 = vld [vmem:[#allocation8 + $0x34] sm:$0xf]
    %v1593 = vld [vmem:[#allocation8 + $0x38] sm:$0xf]
    %v1594 = vld [vmem:[#allocation8 + $0x3c] sm:$0xf]
    %v1595 = vld [vmem:[#allocation8 + $0x40] sm:$0xf]
    %v1596 = vld [vmem:[#allocation8 + $0x44] sm:$0xf]
    %v1597 = vld [vmem:[#allocation8 + $0x48] sm:$0xf]
    %v1598 = vld [vmem:[#allocation8 + $0x4c] sm:$0xf]
    %v1599 = vld [vmem:[#allocation8 + $0x50] sm:$0xf]
    %v1600 = vld [vmem:[#allocation8 + $0x54] sm:$0xf]
    %v1601 = vld [vmem:[#allocation8 + $0x58] sm:$0xf]
    %v1602 = vld [vmem:[#allocation8 + $0x5c] sm:$0xf]
    %v1603 = vld [vmem:[#allocation8 + $0x60] sm:$0xf]
    %v1604 = vld [vmem:[#allocation8 + $0x64] sm:$0xf]
    %v1605 = vld [vmem:[#allocation8 + $0x68] sm:$0xf]
    %v1606 = vld [vmem:[#allocation8 + $0x6c] sm:$0xf]
    %v1607 = vld [vmem:[#allocation8 + $0x70] sm:$0xf]
    %v1608 = vld [vmem:[#allocation8 + $0x74] sm:$0xf]
    %v1609 = vld [vmem:[#allocation8 + $0x78] sm:$0xf]
    %v1610 = vld [vmem:[#allocation8 + $0x7c] sm:$0xf]
    %v1611 = vld [vmem:[#allocation8 + $0x80] sm:$0xf]
    %v1612 = vld [vmem:[#allocation8 + $0x84] sm:$0xf]
    %v1613 = vld [vmem:[#allocation8 + $0x88] sm:$0xf]
    %v1614 = vld [vmem:[#allocation8 + $0x8c] sm:$0xf]
    %v1615 = vld [vmem:[#allocation8 + $0x90] sm:$0xf]
    %v1616 = vld [vmem:[#allocation8 + $0x94] sm:$0xf]
    %v1617 = vld [vmem:[#allocation8 + $0x98] sm:$0xf]
    %v1618 = vld [vmem:[#allocation8 + $0x9c] sm:$0xf]
    %v1619 = vld [vmem:[#allocation8 + $0xa0] sm:$0xf]
    %v1620 = vld [vmem:[#allocation8 + $0xa4] sm:$0xf]
    %v1621 = vld [vmem:[#allocation8 + $0xa8] sm:$0xf]
    %v1622 = vld [vmem:[#allocation8 + $0xac] sm:$0xf]
    %v1623 = vld [vmem:[#allocation8 + $0xb0] sm:$0xf]
    %v1624 = vld [vmem:[#allocation8 + $0xb4] sm:$0xf]
    %v1625 = vld [vmem:[#allocation8 + $0xb8] sm:$0xf]
    %v1626 = vld [vmem:[#allocation8 + $0xbc] sm:$0xf]
    %v1627 = vld [vmem:[#allocation8 + $0xc0] sm:$0xf]
    %v1628 = vld [vmem:[#allocation8 + $0xc4] sm:$0xf]
    %v1629 = vld [vmem:[#allocation8 + $0xc8] sm:$0xf]
    %v1630 = vld [vmem:[#allocation8 + $0xcc] sm:$0xf]
    %v1631 = vld [vmem:[#allocation8 + $0xd0] sm:$0xf]
    %v1632 = vld [vmem:[#allocation8 + $0xd4] sm:$0xf]
    %v1633 = vld [vmem:[#allocation8 + $0xd8] sm:$0xf]
    %v1634 = vld [vmem:[#allocation8 + $0xdc] sm:$0xf]
    %v1635 = vld [vmem:[#allocation8 + $0xe0] sm:$0xf]
    %v1636 = vld [vmem:[#allocation8 + $0xe4] sm:$0xf]
    %v1637 = vld [vmem:[#allocation8 + $0xe8] sm:$0xf]
    %v1638 = vld [vmem:[#allocation8 + $0xec] sm:$0xf]
    %v1639 = vld [vmem:[#allocation8 + $0xf0] sm:$0xf]
    %v1640 = vld [vmem:[#allocation8 + $0xf4] sm:$0xf]
    %v1641 = vld [vmem:[#allocation8 + $0xf8] sm:$0xf]
    %v1642 = vld [vmem:[#allocation8 + $0xfc] sm:$0xf]
    %v1643 = vld [vmem:[%s6] sm:$0x1]
    %v1645 = vlaneseq
    %v1646 = vshrl.u32 %v1645, 7
    %v1647 = vsub.s32 0, %v1646
    %v1648 = vrot.slane %v1643, %v1647
    %v1714 = vunpack.c.l.b16 %v1579
    %v1715 = vunpack.c.l.b16 %v1580
    %v1716 = vunpack.c.l.b16 %v1581
    %v1717 = vunpack.c.l.b16 %v1582
    %v1718 = vunpack.c.l.b16 %v1583
    %v1719 = vunpack.c.l.b16 %v1584
    %v1720 = vunpack.c.l.b16 %v1585
    %v1721 = vunpack.c.l.b16 %v1586
    %v1722 = vunpack.c.l.b16 %v1587
    %v1723 = vunpack.c.l.b16 %v1588
    %v1724 = vunpack.c.l.b16 %v1589
    %v1725 = vunpack.c.l.b16 %v1590
    %v1726 = vunpack.c.l.b16 %v1591
    %v1727 = vunpack.c.l.b16 %v1592
    %v1728 = vunpack.c.l.b16 %v1593
    %v1729 = vunpack.c.l.b16 %v1594
    %v1730 = vunpack.c.l.b16 %v1595
    %v1731 = vunpack.c.l.b16 %v1596
    %v1732 = vunpack.c.l.b16 %v1597
    %v1733 = vunpack.c.l.b16 %v1598
    %v1734 = vunpack.c.l.b16 %v1599
    %v1735 = vunpack.c.l.b16 %v1600
    %v1736 = vunpack.c.l.b16 %v1601
    %v1737 = vunpack.c.l.b16 %v1602
    %v1738 = vunpack.c.l.b16 %v1603
    %v1739 = vunpack.c.l.b16 %v1604
    %v1740 = vunpack.c.l.b16 %v1605
    %v1741 = vunpack.c.l.b16 %v1606
    %v1742 = vunpack.c.l.b16 %v1607
    %v1743 = vunpack.c.l.b16 %v1608
    %v1744 = vunpack.c.l.b16 %v1609
    %v1745 = vunpack.c.l.b16 %v1610
    %v1746 = vunpack.c.l.b16 %v1611
    %v1747 = vunpack.c.l.b16 %v1612
    %v1748 = vunpack.c.l.b16 %v1613
    %v1749 = vunpack.c.l.b16 %v1614
    %v1750 = vunpack.c.l.b16 %v1615
    %v1751 = vunpack.c.l.b16 %v1616
    %v1752 = vunpack.c.l.b16 %v1617
    %v1753 = vunpack.c.l.b16 %v1618
    %v1754 = vunpack.c.l.b16 %v1619
    %v1755 = vunpack.c.l.b16 %v1620
    %v1756 = vunpack.c.l.b16 %v1621
    %v1757 = vunpack.c.l.b16 %v1622
    %v1758 = vunpack.c.l.b16 %v1623
    %v1759 = vunpack.c.l.b16 %v1624
    %v1760 = vunpack.c.l.b16 %v1625
    %v1761 = vunpack.c.l.b16 %v1626
    %v1762 = vunpack.c.l.b16 %v1627
    %v1763 = vunpack.c.l.b16 %v1628
    %v1764 = vunpack.c.l.b16 %v1629
    %v1765 = vunpack.c.l.b16 %v1630
    %v1766 = vunpack.c.l.b16 %v1631
    %v1767 = vunpack.c.l.b16 %v1632
    %v1768 = vunpack.c.l.b16 %v1633
    %v1769 = vunpack.c.l.b16 %v1634
    %v1770 = vunpack.c.l.b16 %v1635
    %v1771 = vunpack.c.l.b16 %v1636
    %v1772 = vunpack.c.l.b16 %v1637
    %v1773 = vunpack.c.l.b16 %v1638
    %v1774 = vunpack.c.l.b16 %v1639
    %v1775 = vunpack.c.l.b16 %v1640
    %v1776 = vunpack.c.l.b16 %v1641
    %v1777 = vunpack.c.l.b16 %v1642
    %v1778 = vpack.c.b16 %v1715, %v1714
    %v1779 = vpack.c.b16 %v1717, %v1716
    %v1780 = vpack.c.b16 %v1719, %v1718
    %v1781 = vpack.c.b16 %v1721, %v1720
    %v1782 = vpack.c.b16 %v1723, %v1722
    %v1783 = vpack.c.b16 %v1725, %v1724
    %v1784 = vpack.c.b16 %v1727, %v1726
    %v1785 = vpack.c.b16 %v1729, %v1728
    %v1786 = vpack.c.b16 %v1731, %v1730
    %v1787 = vpack.c.b16 %v1733, %v1732
    %v1788 = vpack.c.b16 %v1735, %v1734
    %v1789 = vpack.c.b16 %v1737, %v1736
    %v1790 = vpack.c.b16 %v1739, %v1738
    %v1791 = vpack.c.b16 %v1741, %v1740
    %v1792 = vpack.c.b16 %v1743, %v1742
    %v1793 = vpack.c.b16 %v1745, %v1744
    %v1794 = vpack.c.b16 %v1747, %v1746
    %v1795 = vpack.c.b16 %v1749, %v1748
    %v1796 = vpack.c.b16 %v1751, %v1750
    %v1797 = vpack.c.b16 %v1753, %v1752
    %v1798 = vpack.c.b16 %v1755, %v1754
    %v1799 = vpack.c.b16 %v1757, %v1756
    %v1800 = vpack.c.b16 %v1759, %v1758
    %v1801 = vpack.c.b16 %v1761, %v1760
    %v1802 = vpack.c.b16 %v1763, %v1762
    %v1803 = vpack.c.b16 %v1765, %v1764
    %v1804 = vpack.c.b16 %v1767, %v1766
    %v1805 = vpack.c.b16 %v1769, %v1768
    %v1806 = vpack.c.b16 %v1771, %v1770
    %v1807 = vpack.c.b16 %v1773, %v1772
    %v1808 = vpack.c.b16 %v1775, %v1774
    %v1809 = vpack.c.b16 %v1777, %v1776
    %1842 = vmatprep.subr.bf16.mxu0 0
    %1843 = vmatpush1.bf16.msra.mxu0 %v1785
    %1844 = vmatprep.subr.bf16.mxu0 0
    %1845 = vmatpush1.bf16.msra.mxu0 %v1784
    %1846 = vmatprep.subr.bf16.mxu0 0
    %1847 = vmatpush1.bf16.msra.mxu0 %v1783
    %1848 = vmatprep.subr.bf16.mxu0 0
    %1849 = vmatpush1.bf16.msra.mxu0 %v1782
    %1850 = vmatprep.subr.bf16.mxu0 0
    %1851 = vmatpush1.bf16.msra.mxu0 %v1781
    %1852 = vmatprep.subr.bf16.mxu0 0
    %1853 = vmatpush1.bf16.msra.mxu0 %v1780
    %1854 = vmatprep.subr.bf16.mxu0 0
    %1855 = vmatpush1.bf16.msra.mxu0 %v1779
    %1856 = vmatprep.subr.bf16.mxu0 0
    %1857 = vmatpush1.bf16.msra.mxu0 %v1778
    %1858 = vmatprep.subr.bf16.mxu0 0
    %1859 = vmatpush2.bf16.msra.mxu0 %v1793
    %1860 = vmatprep.subr.bf16.mxu0 0
    %1861 = vmatpush2.bf16.msra.mxu0 %v1792
    %1862 = vmatprep.subr.bf16.mxu0 0
    %1863 = vmatpush2.bf16.msra.mxu0 %v1791
    %1864 = vmatprep.subr.bf16.mxu0 0
    %1865 = vmatpush2.bf16.msra.mxu0 %v1790
    %1866 = vmatprep.subr.bf16.mxu0 0
    %1867 = vmatpush2.bf16.msra.mxu0 %v1789
    %1868 = vmatprep.subr.bf16.mxu0 0
    %1869 = vmatpush2.bf16.msra.mxu0 %v1788
    %1870 = vmatprep.subr.bf16.mxu0 0
    %1871 = vmatpush2.bf16.msra.mxu0 %v1787
    %1872 = vmatprep.subr.bf16.mxu0 0
    %1873 = vmatpush2.bf16.msra.mxu0 %v1786
    %1874 = vmatprep.mubr.bf16.mxu0 %v1576
    %1875 = vmatmul.mubr.bf16.gmra.mxu0 %v1575
    %v1876 = vpop.f32.mrf.mxu0
    %v1877 = vadd.f32 %v1648, %v1876
    %v1878 = vpop.f32.mrf.mxu0
    %v1879 = vpop.f32.mrf.mxu0
    %v1880 = vpop.f32.mrf.mxu0
    %1881 = vdwg.mxu0
    %1882 = vmatprep.subr.bf16.mxu0 0
    %1883 = vmatpush1.bf16.msra.mxu0 %v1801
    %1884 = vmatprep.subr.bf16.mxu0 0
    %1885 = vmatpush1.bf16.msra.mxu0 %v1800
    %1886 = vmatprep.subr.bf16.mxu0 0
    %1887 = vmatpush1.bf16.msra.mxu0 %v1799
    %1888 = vmatprep.subr.bf16.mxu0 0
    %1889 = vmatpush1.bf16.msra.mxu0 %v1798
    %1890 = vmatprep.subr.bf16.mxu0 0
    %1891 = vmatpush1.bf16.msra.mxu0 %v1797
    %1892 = vmatprep.subr.bf16.mxu0 0
    %1893 = vmatpush1.bf16.msra.mxu0 %v1796
    %1894 = vmatprep.subr.bf16.mxu0 0
    %1895 = vmatpush1.bf16.msra.mxu0 %v1795
    %1896 = vmatprep.subr.bf16.mxu0 0
    %1897 = vmatpush1.bf16.msra.mxu0 %v1794
    %1898 = vmatprep.subr.bf16.mxu0 0
    %1899 = vmatpush2.bf16.msra.mxu0 %v1809
    %1900 = vmatprep.subr.bf16.mxu0 0
    %1901 = vmatpush2.bf16.msra.mxu0 %v1808
    %1902 = vmatprep.subr.bf16.mxu0 0
    %1903 = vmatpush2.bf16.msra.mxu0 %v1807
    %1904 = vmatprep.subr.bf16.mxu0 0
    %1905 = vmatpush2.bf16.msra.mxu0 %v1806
    %1906 = vmatprep.subr.bf16.mxu0 0
    %1907 = vmatpush2.bf16.msra.mxu0 %v1805
    %1908 = vmatprep.subr.bf16.mxu0 0
    %1909 = vmatpush2.bf16.msra.mxu0 %v1804
    %1910 = vmatprep.subr.bf16.mxu0 0
    %1911 = vmatpush2.bf16.msra.mxu0 %v1803
    %1912 = vmatprep.subr.bf16.mxu0 0
    %1913 = vmatpush2.bf16.msra.mxu0 %v1802
    %1914 = vmatprep.mubr.bf16.mxu0 %v1578
    %1915 = vmatmul.mubr.bf16.gmra.mxu0 %v1577
    %v1916 = vpop.f32.mrf.mxu0
    %v1917 = vadd.f32 %v1877, %v1916
    %v1918 = vpop.f32.mrf.mxu0
    %v1919 = vpop.f32.mrf.mxu0
    %v1920 = vpop.f32.mrf.mxu0
    %1921 = vdwg.mxu0
    %1922 = vst [vmem:[#allocation10] sm:$0x3] %v1917
    // Predicated region
    $region46: #{tpu_custom_call.1} parent=1 // pred_check
      _
    $region47: #{tpu_custom_call.1} parent=1 // pred_check_branch
      %1924 = sbr.rel (0) target = $region49
    $region48: #{tpu_custom_call.1} parent=1 // pred_region
      %s1926 = ssub.s32 32, 32
      %1927 = vsyncadd [#allocation4], %s1926
      %s1929 = sshll.u32 [#allocation10], 4
      %s1930 = int_to_ptr.vmem [resolvable:$true] %s1929
      %1932 = dma.vmem_to_hbm [thread:$0]  %s1930, 32, %s7, [#allocation4]
    $region49: #{tpu_custom_call.1} parent=1 // pred_fallthru
      _
    // Predicated region
    $region50: #{tpu_custom_call.1} parent=1 // pred_check
      _
    $region51: #{tpu_custom_call.1} parent=1 // pred_check_branch
      %1934 = sbr.rel (0) target = $region53
    $region52: #{tpu_custom_call.1} parent=1 // pred_region
      %1935 = dma.done [#allocation4], 32
    $region53: #{tpu_custom_call.1} parent=1 // pred_fallthru
      _
    %1936 = vsyncpa [#allocation3], 1
    %1937 = vsyncpa [#allocation6], 1
    %1938 = vsyncpa [#allocation9], 1
    %1939 = vsyncpa [#allocation4], 1

</llo_original>
